<compile_context>
chip_gen: v7x
topology: tpu7x:2x2x1
jax: 0.10.0
libtpu: 0.0.40
codegen_flags: <defaults>
</compile_context>

<pallas_src>
import functools

import jax
import jax.numpy as jnp
from jax import lax
from jax.experimental import pallas as pl
from jax.experimental.pallas import tpu as pltpu

GAP = 8   # zero rows between stacked batch rows (>= max conv halo; keeps rows 8-aligned)
OFF = 8   # zero halo rows above/below the stacked live region (8-aligned)


# ---------------------------------------------------------------------------
# Fused kernel: whole network, all batch rows, one grid step, all in VMEM.
# ---------------------------------------------------------------------------
def fcn_kernel(xcol_ref, w1_ref, b1_ref, w2_ref, b2_ref, w3_ref, b3_ref,
               pool_ref, wfc_ref, bfc_ref, o_ref,
               h1pad_ref, h2pad_ref, col2_ref, col3_ref,
               *, B, L, K2, P2, K3, P3):
    f32 = jnp.float32
    Lstack = B * L + (B - 1) * GAP          # stacked live + gap extent

    # Zero only the halo / gap rows of the padded activation scratches (the live rows
    # are fully overwritten below).  All blocks are 8-row aligned.
    for ref in (h1pad_ref, h2pad_ref):
        C = ref.shape[1]
        ref[pl.ds(0, OFF), :] = jnp.zeros((OFF, C), f32)
        for b in range(B - 1):
            g0 = OFF + b * (L + GAP) + L
            ref[pl.ds(g0, GAP), :] = jnp.zeros((GAP, C), f32)
        ref[pl.ds(OFF + Lstack, OFF), :] = jnp.zeros((OFF, C), f32)

    # ---- Layer 1: one (Lstack, K1) @ (K1, C1) MXU dot + shift + ReLU ----------------
    h = jnp.dot(xcol_ref[...], w1_ref[...].astype(f32), preferred_element_type=f32)
    h = jnp.maximum(h + b1_ref[...], 0.0)                      # (Lstack, C1)
    for b in range(B):                                          # store live rows only
        r = b * (L + GAP)
        h1pad_ref[pl.ds(OFF + r, L), :] = h[r:r + L, :]

    # ---- Layer 2: im2col scatter + one (Lstack, K2*C1) @ (K2*C1, C2) dot ------------
    C1 = h1pad_ref.shape[1]
    for k in range(K2):
        col2_ref[:, pl.ds(k * C1, C1)] = h1pad_ref[pl.ds(OFF - P2 + k, Lstack), :]
    h = jnp.dot(col2_ref[...], w2_ref[...].astype(f32), preferred_element_type=f32)
    h = jnp.maximum(h + b2_ref[...], 0.0)                      # (Lstack, C2)
    for b in range(B):
        r = b * (L + GAP)
        h2pad_ref[pl.ds(OFF + r, L), :] = h[r:r + L, :]

    # ---- Layer 3: im2col scatter + one (Lstack, K3*C2) @ (K3*C2, C3) dot ------------
    C2 = h2pad_ref.shape[1]
    for k in range(K3):
        col3_ref[:, pl.ds(k * C2, C2)] = h2pad_ref[pl.ds(OFF - P3 + k, Lstack), :]
    h = jnp.dot(col3_ref[...], w3_ref[...].astype(f32), preferred_element_type=f32)
    h = jnp.maximum(h + b3_ref[...], 0.0)                      # (Lstack, C3)

    # ---- AdaptiveAvgPool1d(1) + Linear for all batch rows at once -------------------
    # pool_ref is a (B, Lstack) averaging matrix (1/L at each row's live positions, 0 in
    # the gaps), so the reduction runs on the MXU and the gap garbage is masked for free.
    pooled = jnp.dot(pool_ref[...], h, preferred_element_type=f32)        # (B, C3)
    o_ref[...] = (jnp.dot(pooled, wfc_ref[...], preferred_element_type=f32)
                  + bfc_ref[...])                                         # one (B,5) store


# ---------------------------------------------------------------------------
# Wrapper: one pallas_call, one grid step, for the whole forward pass.
# ---------------------------------------------------------------------------
@jax.jit
def fcn_forward(x_ncw, params):
    """x_ncw: (B, 1, L) like the PyTorch module; returns (B, n_cls)."""
    (w1, b1), (w2, b2), (w3, b3), (wfc, bfc) = params
    B, C_in, L = x_ncw.shape
    assert C_in == 1 and L % 8 == 0 and (L + GAP) % 8 == 0

    K1, _, C1 = w1.shape
    K2, _, C2 = w2.shape
    K3, _, C3 = w3.shape
    n_cls = wfc.shape[1]
    P1, P2, P3 = (K1 - 1) // 2, (K2 - 1) // 2, (K3 - 1) // 2   # PyTorch left pads
    assert GAP >= max(P2, K2 - 1 - P2, P3, K3 - 1 - P3)
    assert OFF >= max(P2, K2 - 1 - P2, P3, K3 - 1 - P3)
    Lstack = B * L + (B - 1) * GAP
    Ltot = OFF + Lstack + OFF

    # ---- tiny host-side prep (a few hundred floats) ---------------------------------
    # Layer-1 im2col of the raw scalar signal, stacked over batch with zero gaps.
    x = x_ncw[:, 0, :].astype(jnp.float32)                     # (B, L)
    xp = jnp.pad(x, ((0, 0), (P1, K1 - 1 - P1)))               # PyTorch 'same' (even K1)
    idx = jnp.arange(L)[:, None] + jnp.arange(K1)[None, :]     # (L, K1)
    xrows = xp[:, idx]                                         # (B, L, K1)
    blocks = []
    for b in range(B):
        blocks.append(xrows[b])
        if b < B - 1:
            blocks.append(jnp.zeros((GAP, K1), jnp.float32))
    xcol = jnp.concatenate(blocks, axis=0)                     # (Lstack, K1)

    # Per-batch averaging matrix for the pooled MXU reduction.
    poolmat = jnp.zeros((B, Lstack), jnp.float32)
    for b in range(B):
        s = b * (L + GAP)
        poolmat = poolmat.at[b, s:s + L].set(1.0 / L)

    # BN scale / conv bias are already folded into the weights; ship conv weights bf16.
    w1m = w1.reshape(K1, C1).astype(jnp.bfloat16)
    w2m = w2.reshape(K2 * C1, C2).astype(jnp.bfloat16)         # im2col row layout k*C1+c
    w3m = w3.reshape(K3 * C2, C3).astype(jnp.bfloat16)
    bfc2 = bfc.reshape(1, n_cls).astype(jnp.float32)

    kern = functools.partial(fcn_kernel, B=B, L=L, K2=K2, P2=P2, K3=K3, P3=P3)

    out = pl.pallas_call(
        kern,
        out_shape=jax.ShapeDtypeStruct((B, n_cls), jnp.float32),
        grid=(1,),                                             # whole network, one step
        in_specs=[
            pl.BlockSpec((Lstack, K1), lambda i: (0, 0)),      # layer-1 im2col (f32)
            pl.BlockSpec((K1, C1), lambda i: (0, 0)),          # w1 (bf16)
            pl.BlockSpec((1, C1), lambda i: (0, 0)),           # shift1
            pl.BlockSpec((K2 * C1, C2), lambda i: (0, 0)),     # w2 (bf16, im2col layout)
            pl.BlockSpec((1, C2), lambda i: (0, 0)),           # shift2
            pl.BlockSpec((K3 * C2, C3), lambda i: (0, 0)),     # w3 (bf16, im2col layout)
            pl.BlockSpec((1, C3), lambda i: (0, 0)),           # shift3
            pl.BlockSpec((B, Lstack), lambda i: (0, 0)),       # pooling matrix
            pl.BlockSpec((C3, n_cls), lambda i: (0, 0)),       # fc weight (f32)
            pl.BlockSpec((1, n_cls), lambda i: (0, 0)),        # fc bias
        ],
        out_specs=pl.BlockSpec((B, n_cls), lambda i: (0, 0)),
        scratch_shapes=[
            pltpu.VMEM((Ltot, C1), jnp.float32),               # zero-padded layer-1 act
            pltpu.VMEM((Ltot, C2), jnp.float32),               # zero-padded layer-2 act
            pltpu.VMEM((Lstack, K2 * C1), jnp.float32),        # layer-2 im2col
            pltpu.VMEM((Lstack, K3 * C2), jnp.float32),        # layer-3 im2col
        ],
        compiler_params=pltpu.CompilerParams(
            dimension_semantics=("arbitrary",)),
    )(xcol, w1m, b1, w2m, b2, w3m, b3, poolmat, wfc, bfc2)
    return out


# ---------------------------------------------------------------------------
# Synthetic parameters with eval-mode BN folded into the conv weights.
# The folded weights are rounded to bf16 once, and BOTH the kernel and the reference use
# those exact values (the kernel's bf16->f32 upcast is lossless), keeping allclose tight.
# ---------------------------------------------------------------------------
def make_layer_params(key, K, C_in, C_out, eps=1e-5):
    ks = jax.random.split(key, 6)
    w = 0.1 * jax.random.normal(ks[0], (K, C_in, C_out), jnp.float32)
    conv_bias = 0.1 * jax.random.normal(ks[1], (C_out,), jnp.float32)
    gamma = jax.random.uniform(ks[2], (C_out,), jnp.float32, 0.5, 1.5)
    beta = 0.1 * jax.random.normal(ks[3], (C_out,), jnp.float32)
    run_mean = 0.1 * jax.random.normal(ks[4], (C_out,), jnp.float32)
    run_var = jax.random.uniform(ks[5], (C_out,), jnp.float32, 0.5, 1.5)
    scale = gamma / jnp.sqrt(run_var + eps)
    w_eff = (w * scale).astype(jnp.bfloat16).astype(jnp.float32)   # folded + bf16-rounded
    shift = (conv_bias - run_mean) * scale + beta
    return w_eff, shift.reshape(1, C_out)


def fcn_reference(x_ncw, params):
    """Pure-JAX reference (lax.conv) using the same folded weights / shifts."""
    (w1, b1), (w2, b2), (w3, b3), (wfc, bfc) = params
    x = jnp.transpose(x_ncw, (0, 2, 1)).astype(jnp.float32)    # (B, L, C)
    for w, sh in ((w1, b1), (w2, b2), (w3, b3)):
        K = w.shape[0]
        pad_l = (K - 1) // 2
        pad_r = K - 1 - pad_l
        y = lax.conv_general_dilated(
            x, w, window_strides=(1,), padding=[(pad_l, pad_r)],
            dimension_numbers=("NWC", "WIO", "NWC"))
        x = jnp.maximum(y + sh, 0.0)
    pooled = jnp.mean(x, axis=1)
    return pooled @ wfc + bfc.reshape(1, -1)


if __name__ == "__main__":
    key = jax.random.PRNGKey(0)
    k_x, k1, k2, k3, k_fc = jax.random.split(key, 5)

    B, C_in, L = 2, 1, 16   # matches the PyTorch module's NCW input convention
    x = jax.random.normal(k_x, (B, C_in, L), jnp.float32)

    p1 = make_layer_params(k1, K=8, C_in=1, C_out=128)     # cv1: Conv1d(1,128,8,'same')
    p2 = make_layer_params(k2, K=5, C_in=128, C_out=256)   # cv2: Conv1d(128,256,5,pad=2)
    p3 = make_layer_params(k3, K=3, C_in=256, C_out=128)   # cv3: Conv1d(256,128,3,pad=1)
    kw, kb = jax.random.split(k_fc)
    w_fc = 0.1 * jax.random.normal(kw, (128, 5), jnp.float32)
    b_fc = 0.1 * jax.random.normal(kb, (5,), jnp.float32)
    params = (p1, p2, p3, (w_fc, b_fc))

    out = jax.block_until_ready(fcn_forward(x, params))
    ref = jax.block_until_ready(fcn_reference(x, params))

    assert out.shape == (B, 5), out.shape
    assert jnp.allclose(out, ref, rtol=1e-4, atol=1e-4), (out, ref)
    print("KERNEL_OK")
</pallas_src>

<mosaic_0001>
module attributes {stable_mosaic.version = 11 : i64} {
  func.func @fcn_kernel(%arg0: i32, %arg1: memref<40x8xf32, #tpu.memory_space<vmem>>, %arg2: memref<8x128xbf16, #tpu.memory_space<vmem>>, %arg3: memref<1x128xf32, #tpu.memory_space<vmem>>, %arg4: memref<640x256xbf16, #tpu.memory_space<vmem>>, %arg5: memref<1x256xf32, #tpu.memory_space<vmem>>, %arg6: memref<768x128xbf16, #tpu.memory_space<vmem>>, %arg7: memref<1x128xf32, #tpu.memory_space<vmem>>, %arg8: memref<2x40xf32, #tpu.memory_space<vmem>>, %arg9: memref<128x5xf32, #tpu.memory_space<vmem>>, %arg10: memref<1x5xf32, #tpu.memory_space<vmem>>, %arg11: memref<2x5xf32, #tpu.memory_space<vmem>>, %arg12: memref<56x128xf32, #tpu.memory_space<vmem>>, %arg13: memref<56x256xf32, #tpu.memory_space<vmem>>, %arg14: memref<40x640xf32, #tpu.memory_space<vmem>>, %arg15: memref<40x768xf32, #tpu.memory_space<vmem>>) attributes {dimension_semantics = [#tpu.dimension_semantics<arbitrary>], iteration_bounds = array<i64: 1>, scalar_prefetch = 0 : i64, scratch_operands = 4 : i64, tpu.core_type = #tpu.core_type<tc>, window_params = [{pipeline_mode = #tpu.pipeline_mode<synchronous>, transform_indices = @transform_0, window_bounds = array<i64: 40, 8>}, {pipeline_mode = #tpu.pipeline_mode<synchronous>, transform_indices = @transform_1, window_bounds = array<i64: 8, 128>}, {pipeline_mode = #tpu.pipeline_mode<synchronous>, transform_indices = @transform_2, window_bounds = array<i64: 1, 128>}, {pipeline_mode = #tpu.pipeline_mode<synchronous>, transform_indices = @transform_3, window_bounds = array<i64: 640, 256>}, {pipeline_mode = #tpu.pipeline_mode<synchronous>, transform_indices = @transform_4, window_bounds = array<i64: 1, 256>}, {pipeline_mode = #tpu.pipeline_mode<synchronous>, transform_indices = @transform_5, window_bounds = array<i64: 768, 128>}, {pipeline_mode = #tpu.pipeline_mode<synchronous>, transform_indices = @transform_6, window_bounds = array<i64: 1, 128>}, {pipeline_mode = #tpu.pipeline_mode<synchronous>, transform_indices = @transform_7, window_bounds = array<i64: 2, 40>}, {pipeline_mode = #tpu.pipeline_mode<synchronous>, transform_indices = @transform_8, window_bounds = array<i64: 128, 5>}, {pipeline_mode = #tpu.pipeline_mode<synchronous>, transform_indices = @transform_9, window_bounds = array<i64: 1, 5>}, {pipeline_mode = #tpu.pipeline_mode<synchronous>, transform_indices = @transform_10, window_bounds = array<i64: 2, 5>}]} {
    %cst = arith.constant 0.000000e+00 : f32
    %0 = vector.broadcast %cst : f32 to vector<8x128xf32>
    %c0 = arith.constant 0 : index
    %c0_0 = arith.constant 0 : index
    %1 = vector.load %arg12[%c0, %c0_0] : memref<56x128xf32, #tpu.memory_space<vmem>>, vector<8x128xf32>
    tpu.vector_store %arg12[%c0, %c0_0], %0 {strides = array<i32>} : memref<56x128xf32, #tpu.memory_space<vmem>>, vector<8x128xf32>,
    %cst_1 = arith.constant 0.000000e+00 : f32
    %2 = vector.broadcast %cst_1 : f32 to vector<8x128xf32>
    %c24 = arith.constant 24 : index
    %c0_2 = arith.constant 0 : index
    %3 = vector.load %arg12[%c24, %c0_2] : memref<56x128xf32, #tpu.memory_space<vmem>>, vector<8x128xf32>
    tpu.vector_store %arg12[%c24, %c0_2], %2 {strides = array<i32>} : memref<56x128xf32, #tpu.memory_space<vmem>>, vector<8x128xf32>,
    %cst_3 = arith.constant 0.000000e+00 : f32
    %4 = vector.broadcast %cst_3 : f32 to vector<8x128xf32>
    %c48 = arith.constant 48 : index
    %c0_4 = arith.constant 0 : index
    %5 = vector.load %arg12[%c48, %c0_4] : memref<56x128xf32, #tpu.memory_space<vmem>>, vector<8x128xf32>
    tpu.vector_store %arg12[%c48, %c0_4], %4 {strides = array<i32>} : memref<56x128xf32, #tpu.memory_space<vmem>>, vector<8x128xf32>,
    %cst_5 = arith.constant 0.000000e+00 : f32
    %6 = vector.broadcast %cst_5 : f32 to vector<8x256xf32>
    %c0_6 = arith.constant 0 : index
    %c0_7 = arith.constant 0 : index
    %7 = vector.load %arg13[%c0_6, %c0_7] : memref<56x256xf32, #tpu.memory_space<vmem>>, vector<8x256xf32>
    tpu.vector_store %arg13[%c0_6, %c0_7], %6 {strides = array<i32>} : memref<56x256xf32, #tpu.memory_space<vmem>>, vector<8x256xf32>,
    %cst_8 = arith.constant 0.000000e+00 : f32
    %8 = vector.broadcast %cst_8 : f32 to vector<8x256xf32>
    %c24_9 = arith.constant 24 : index
    %c0_10 = arith.constant 0 : index
    %9 = vector.load %arg13[%c24_9, %c0_10] : memref<56x256xf32, #tpu.memory_space<vmem>>, vector<8x256xf32>
    tpu.vector_store %arg13[%c24_9, %c0_10], %8 {strides = array<i32>} : memref<56x256xf32, #tpu.memory_space<vmem>>, vector<8x256xf32>,
    %cst_11 = arith.constant 0.000000e+00 : f32
    %10 = vector.broadcast %cst_11 : f32 to vector<8x256xf32>
    %c48_12 = arith.constant 48 : index
    %c0_13 = arith.constant 0 : index
    %11 = vector.load %arg13[%c48_12, %c0_13] : memref<56x256xf32, #tpu.memory_space<vmem>>, vector<8x256xf32>
    tpu.vector_store %arg13[%c48_12, %c0_13], %10 {strides = array<i32>} : memref<56x256xf32, #tpu.memory_space<vmem>>, vector<8x256xf32>,
    %c0_14 = arith.constant 0 : index
    %c0_15 = arith.constant 0 : index
    %12 = vector.load %arg1[%c0_14, %c0_15] : memref<40x8xf32, #tpu.memory_space<vmem>>, vector<40x8xf32>
    %c0_16 = arith.constant 0 : index
    %c0_17 = arith.constant 0 : index
    %13 = vector.load %arg2[%c0_16, %c0_17] : memref<8x128xbf16, #tpu.memory_space<vmem>>, vector<8x128xbf16>
    %14 = arith.extf %13 : vector<8x128xbf16> to vector<8x128xf32>
    %cst_18 = arith.constant dense<0.000000e+00> : vector<40x128xf32>
    %15 = tpu.matmul %12, %14, %cst_18 {dimension_numbers = #tpu.dot_dimension_numbers<[1], [0], [0], [1], [0, 0, 1, 1], [], []>} : vector<40x8xf32>, vector<8x128xf32>, vector<40x128xf32> -> vector<40x128xf32>
    %c0_19 = arith.constant 0 : index
    %c0_20 = arith.constant 0 : index
    %16 = vector.load %arg3[%c0_19, %c0_20] : memref<1x128xf32, #tpu.memory_space<vmem>>, vector<1x128xf32>
    %17 = vector.broadcast %16 : vector<1x128xf32> to vector<40x128xf32>
    %18 = arith.addf %15, %17 : vector<40x128xf32>
    %cst_21 = arith.constant 0.000000e+00 : f32
    %19 = vector.broadcast %cst_21 : f32 to vector<40x128xf32>
    %20 = arith.maximumf %18, %19 : vector<40x128xf32>
    %21 = vector.extract_strided_slice %20 {offsets = [0, 0], sizes = [16, 128], strides = [1, 1]} : vector<40x128xf32> to vector<16x128xf32>
    %c8 = arith.constant 8 : index
    %c0_22 = arith.constant 0 : index
    %22 = vector.load %arg12[%c8, %c0_22] : memref<56x128xf32, #tpu.memory_space<vmem>>, vector<16x128xf32>
    tpu.vector_store %arg12[%c8, %c0_22], %21 {strides = array<i32>} : memref<56x128xf32, #tpu.memory_space<vmem>>, vector<16x128xf32>,
    %23 = vector.extract_strided_slice %20 {offsets = [24, 0], sizes = [16, 128], strides = [1, 1]} : vector<40x128xf32> to vector<16x128xf32>
    %c32 = arith.constant 32 : index
    %c0_23 = arith.constant 0 : index
    %24 = vector.load %arg12[%c32, %c0_23] : memref<56x128xf32, #tpu.memory_space<vmem>>, vector<16x128xf32>
    tpu.vector_store %arg12[%c32, %c0_23], %23 {strides = array<i32>} : memref<56x128xf32, #tpu.memory_space<vmem>>, vector<16x128xf32>,
    %c6 = arith.constant 6 : index
    %c0_24 = arith.constant 0 : index
    %25 = vector.load %arg12[%c6, %c0_24] : memref<56x128xf32, #tpu.memory_space<vmem>>, vector<40x128xf32>
    %c0_25 = arith.constant 0 : index
    %c0_26 = arith.constant 0 : index
    %26 = vector.load %arg14[%c0_25, %c0_26] : memref<40x640xf32, #tpu.memory_space<vmem>>, vector<40x128xf32>
    tpu.vector_store %arg14[%c0_25, %c0_26], %25 {strides = array<i32>} : memref<40x640xf32, #tpu.memory_space<vmem>>, vector<40x128xf32>,
    %c7 = arith.constant 7 : index
    %c0_27 = arith.constant 0 : index
    %27 = vector.load %arg12[%c7, %c0_27] : memref<56x128xf32, #tpu.memory_space<vmem>>, vector<40x128xf32>
    %c0_28 = arith.constant 0 : index
    %c128 = arith.constant 128 : index
    %28 = vector.load %arg14[%c0_28, %c128] : memref<40x640xf32, #tpu.memory_space<vmem>>, vector<40x128xf32>
    tpu.vector_store %arg14[%c0_28, %c128], %27 {strides = array<i32>} : memref<40x640xf32, #tpu.memory_space<vmem>>, vector<40x128xf32>,
    %c8_29 = arith.constant 8 : index
    %c0_30 = arith.constant 0 : index
    %29 = vector.load %arg12[%c8_29, %c0_30] : memref<56x128xf32, #tpu.memory_space<vmem>>, vector<40x128xf32>
    %c0_31 = arith.constant 0 : index
    %c256 = arith.constant 256 : index
    %30 = vector.load %arg14[%c0_31, %c256] : memref<40x640xf32, #tpu.memory_space<vmem>>, vector<40x128xf32>
    tpu.vector_store %arg14[%c0_31, %c256], %29 {strides = array<i32>} : memref<40x640xf32, #tpu.memory_space<vmem>>, vector<40x128xf32>,
    %c9 = arith.constant 9 : index
    %c0_32 = arith.constant 0 : index
    %31 = vector.load %arg12[%c9, %c0_32] : memref<56x128xf32, #tpu.memory_space<vmem>>, vector<40x128xf32>
    %c0_33 = arith.constant 0 : index
    %c384 = arith.constant 384 : index
    %32 = vector.load %arg14[%c0_33, %c384] : memref<40x640xf32, #tpu.memory_space<vmem>>, vector<40x128xf32>
    tpu.vector_store %arg14[%c0_33, %c384], %31 {strides = array<i32>} : memref<40x640xf32, #tpu.memory_space<vmem>>, vector<40x128xf32>,
    %c10 = arith.constant 10 : index
    %c0_34 = arith.constant 0 : index
    %33 = vector.load %arg12[%c10, %c0_34] : memref<56x128xf32, #tpu.memory_space<vmem>>, vector<40x128xf32>
    %c0_35 = arith.constant 0 : index
    %c512 = arith.constant 512 : index
    %34 = vector.load %arg14[%c0_35, %c512] : memref<40x640xf32, #tpu.memory_space<vmem>>, vector<40x128xf32>
    tpu.vector_store %arg14[%c0_35, %c512], %33 {strides = array<i32>} : memref<40x640xf32, #tpu.memory_space<vmem>>, vector<40x128xf32>,
    %c0_36 = arith.constant 0 : index
    %c0_37 = arith.constant 0 : index
    %35 = vector.load %arg14[%c0_36, %c0_37] : memref<40x640xf32, #tpu.memory_space<vmem>>, vector<40x640xf32>
    %c0_38 = arith.constant 0 : index
    %c0_39 = arith.constant 0 : index
    %36 = vector.load %arg4[%c0_38, %c0_39] : memref<640x256xbf16, #tpu.memory_space<vmem>>, vector<640x256xbf16>
    %37 = arith.extf %36 : vector<640x256xbf16> to vector<640x256xf32>
    %cst_40 = arith.constant dense<0.000000e+00> : vector<40x256xf32>
    %38 = tpu.matmul %35, %37, %cst_40 {dimension_numbers = #tpu.dot_dimension_numbers<[1], [0], [0], [1], [0, 0, 1, 1], [], []>} : vector<40x640xf32>, vector<640x256xf32>, vector<40x256xf32> -> vector<40x256xf32>
    %c0_41 = arith.constant 0 : index
    %c0_42 = arith.constant 0 : index
    %39 = vector.load %arg5[%c0_41, %c0_42] : memref<1x256xf32, #tpu.memory_space<vmem>>, vector<1x256xf32>
    %40 = vector.broadcast %39 : vector<1x256xf32> to vector<40x256xf32>
    %41 = arith.addf %38, %40 : vector<40x256xf32>
    %cst_43 = arith.constant 0.000000e+00 : f32
    %42 = vector.broadcast %cst_43 : f32 to vector<40x256xf32>
    %43 = arith.maximumf %41, %42 : vector<40x256xf32>
    %44 = vector.extract_strided_slice %43 {offsets = [0, 0], sizes = [16, 256], strides = [1, 1]} : vector<40x256xf32> to vector<16x256xf32>
    %c8_44 = arith.constant 8 : index
    %c0_45 = arith.constant 0 : index
    %45 = vector.load %arg13[%c8_44, %c0_45] : memref<56x256xf32, #tpu.memory_space<vmem>>, vector<16x256xf32>
    tpu.vector_store %arg13[%c8_44, %c0_45], %44 {strides = array<i32>} : memref<56x256xf32, #tpu.memory_space<vmem>>, vector<16x256xf32>,
    %46 = vector.extract_strided_slice %43 {offsets = [24, 0], sizes = [16, 256], strides = [1, 1]} : vector<40x256xf32> to vector<16x256xf32>
    %c32_46 = arith.constant 32 : index
    %c0_47 = arith.constant 0 : index
    %47 = vector.load %arg13[%c32_46, %c0_47] : memref<56x256xf32, #tpu.memory_space<vmem>>, vector<16x256xf32>
    tpu.vector_store %arg13[%c32_46, %c0_47], %46 {strides = array<i32>} : memref<56x256xf32, #tpu.memory_space<vmem>>, vector<16x256xf32>,
    %c7_48 = arith.constant 7 : index
    %c0_49 = arith.constant 0 : index
    %48 = vector.load %arg13[%c7_48, %c0_49] : memref<56x256xf32, #tpu.memory_space<vmem>>, vector<40x256xf32>
    %c0_50 = arith.constant 0 : index
    %c0_51 = arith.constant 0 : index
    %49 = vector.load %arg15[%c0_50, %c0_51] : memref<40x768xf32, #tpu.memory_space<vmem>>, vector<40x256xf32>
    tpu.vector_store %arg15[%c0_50, %c0_51], %48 {strides = array<i32>} : memref<40x768xf32, #tpu.memory_space<vmem>>, vector<40x256xf32>,
    %c8_52 = arith.constant 8 : index
    %c0_53 = arith.constant 0 : index
    %50 = vector.load %arg13[%c8_52, %c0_53] : memref<56x256xf32, #tpu.memory_space<vmem>>, vector<40x256xf32>
    %c0_54 = arith.constant 0 : index
    %c256_55 = arith.constant 256 : index
    %51 = vector.load %arg15[%c0_54, %c256_55] : memref<40x768xf32, #tpu.memory_space<vmem>>, vector<40x256xf32>
    tpu.vector_store %arg15[%c0_54, %c256_55], %50 {strides = array<i32>} : memref<40x768xf32, #tpu.memory_space<vmem>>, vector<40x256xf32>,
    %c9_56 = arith.constant 9 : index
    %c0_57 = arith.constant 0 : index
    %52 = vector.load %arg13[%c9_56, %c0_57] : memref<56x256xf32, #tpu.memory_space<vmem>>, vector<40x256xf32>
    %c0_58 = arith.constant 0 : index
    %c512_59 = arith.constant 512 : index
    %53 = vector.load %arg15[%c0_58, %c512_59] : memref<40x768xf32, #tpu.memory_space<vmem>>, vector<40x256xf32>
    tpu.vector_store %arg15[%c0_58, %c512_59], %52 {strides = array<i32>} : memref<40x768xf32, #tpu.memory_space<vmem>>, vector<40x256xf32>,
    %c0_60 = arith.constant 0 : index
    %c0_61 = arith.constant 0 : index
    %54 = vector.load %arg15[%c0_60, %c0_61] : memref<40x768xf32, #tpu.memory_space<vmem>>, vector<40x768xf32>
    %c0_62 = arith.constant 0 : index
    %c0_63 = arith.constant 0 : index
    %55 = vector.load %arg6[%c0_62, %c0_63] : memref<768x128xbf16, #tpu.memory_space<vmem>>, vector<768x128xbf16>
    %56 = arith.extf %55 : vector<768x128xbf16> to vector<768x128xf32>
    %cst_64 = arith.constant dense<0.000000e+00> : vector<40x128xf32>
    %57 = tpu.matmul %54, %56, %cst_64 {dimension_numbers = #tpu.dot_dimension_numbers<[1], [0], [0], [1], [0, 0, 1, 1], [], []>} : vector<40x768xf32>, vector<768x128xf32>, vector<40x128xf32> -> vector<40x128xf32>
    %c0_65 = arith.constant 0 : index
    %c0_66 = arith.constant 0 : index
    %58 = vector.load %arg7[%c0_65, %c0_66] : memref<1x128xf32, #tpu.memory_space<vmem>>, vector<1x128xf32>
    %59 = vector.broadcast %58 : vector<1x128xf32> to vector<40x128xf32>
    %60 = arith.addf %57, %59 : vector<40x128xf32>
    %cst_67 = arith.constant 0.000000e+00 : f32
    %61 = vector.broadcast %cst_67 : f32 to vector<40x128xf32>
    %62 = arith.maximumf %60, %61 : vector<40x128xf32>
    %c0_68 = arith.constant 0 : index
    %c0_69 = arith.constant 0 : index
    %63 = vector.load %arg8[%c0_68, %c0_69] : memref<2x40xf32, #tpu.memory_space<vmem>>, vector<2x40xf32>
    %cst_70 = arith.constant dense<0.000000e+00> : vector<2x128xf32>
    %64 = tpu.matmul %63, %62, %cst_70 {dimension_numbers = #tpu.dot_dimension_numbers<[1], [0], [0], [1], [0, 0, 1, 1], [], []>} : vector<2x40xf32>, vector<40x128xf32>, vector<2x128xf32> -> vector<2x128xf32>
    %c0_71 = arith.constant 0 : index
    %c0_72 = arith.constant 0 : index
    %65 = vector.load %arg9[%c0_71, %c0_72] : memref<128x5xf32, #tpu.memory_space<vmem>>, vector<128x5xf32>
    %cst_73 = arith.constant dense<0.000000e+00> : vector<2x5xf32>
    %66 = tpu.matmul %64, %65, %cst_73 {dimension_numbers = #tpu.dot_dimension_numbers<[1], [0], [0], [1], [0, 0, 1, 1], [], []>} : vector<2x128xf32>, vector<128x5xf32>, vector<2x5xf32> -> vector<2x5xf32>
    %c0_74 = arith.constant 0 : index
    %c0_75 = arith.constant 0 : index
    %67 = vector.load %arg10[%c0_74, %c0_75] : memref<1x5xf32, #tpu.memory_space<vmem>>, vector<1x5xf32>
    %68 = vector.broadcast %67 : vector<1x5xf32> to vector<2x5xf32>
    %69 = arith.addf %66, %68 : vector<2x5xf32>
    %c0_76 = arith.constant 0 : index
    %c0_77 = arith.constant 0 : index
    %70 = vector.load %arg11[%c0_76, %c0_77] : memref<2x5xf32, #tpu.memory_space<vmem>>, vector<2x5xf32>
    tpu.vector_store %arg11[%c0_76, %c0_77], %69 {strides = array<i32>} : memref<2x5xf32, #tpu.memory_space<vmem>>, vector<2x5xf32>,
    return
  }
  func.func @transform_0(%arg0: i32) -> (i32, i32) {
    %c0_i32 = arith.constant 0 : i32
    %c0_i32_0 = arith.constant 0 : i32
    %c0_i32_1 = arith.constant 0 : i32
    return %c0_i32, %c0_i32_0 : i32, i32
  }
  func.func @transform_1(%arg0: i32) -> (i32, i32) {
    %c0_i32 = arith.constant 0 : i32
    %c0_i32_0 = arith.constant 0 : i32
    %c0_i32_1 = arith.constant 0 : i32
    return %c0_i32, %c0_i32_0 : i32, i32
  }
  func.func @transform_2(%arg0: i32) -> (i32, i32) {
    %c0_i32 = arith.constant 0 : i32
    %c0_i32_0 = arith.constant 0 : i32
    %c0_i32_1 = arith.constant 0 : i32
    return %c0_i32, %c0_i32_0 : i32, i32
  }
  func.func @transform_3(%arg0: i32) -> (i32, i32) {
    %c0_i32 = arith.constant 0 : i32
    %c0_i32_0 = arith.constant 0 : i32
    %c0_i32_1 = arith.constant 0 : i32
    return %c0_i32, %c0_i32_0 : i32, i32
  }
  func.func @transform_4(%arg0: i32) -> (i32, i32) {
    %c0_i32 = arith.constant 0 : i32
    %c0_i32_0 = arith.constant 0 : i32
    %c0_i32_1 = arith.constant 0 : i32
    return %c0_i32, %c0_i32_0 : i32, i32
  }
  func.func @transform_5(%arg0: i32) -> (i32, i32) {
    %c0_i32 = arith.constant 0 : i32
    %c0_i32_0 = arith.constant 0 : i32
    %c0_i32_1 = arith.constant 0 : i32
    return %c0_i32, %c0_i32_0 : i32, i32
  }
  func.func @transform_6(%arg0: i32) -> (i32, i32) {
    %c0_i32 = arith.constant 0 : i32
    %c0_i32_0 = arith.constant 0 : i32
    %c0_i32_1 = arith.constant 0 : i32
    return %c0_i32, %c0_i32_0 : i32, i32
  }
  func.func @transform_7(%arg0: i32) -> (i32, i32) {
    %c0_i32 = arith.constant 0 : i32
    %c0_i32_0 = arith.constant 0 : i32
    %c0_i32_1 = arith.constant 0 : i32
    return %c0_i32, %c0_i32_0 : i32, i32
  }
  func.func @transform_8(%arg0: i32) -> (i32, i32) {
    %c0_i32 = arith.constant 0 : i32
    %c0_i32_0 = arith.constant 0 : i32
    %c0_i32_1 = arith.constant 0 : i32
    return %c0_i32, %c0_i32_0 : i32, i32
  }
  func.func @transform_9(%arg0: i32) -> (i32, i32) {
    %c0_i32 = arith.constant 0 : i32
    %c0_i32_0 = arith.constant 0 : i32
    %c0_i32_1 = arith.constant 0 : i32
    return %c0_i32, %c0_i32_0 : i32, i32
  }
  func.func @transform_10(%arg0: i32) -> (i32, i32) {
    %c0_i32 = arith.constant 0 : i32
    %c0_i32_0 = arith.constant 0 : i32
    %c0_i32_1 = arith.constant 0 : i32
    return %c0_i32, %c0_i32_0 : i32, i32
  }
}

</mosaic_0001>

<llo_original>
// kernel: fcn_forward.1
$region0: #{fcn_forward.1}
  #allocation0 [shape = 'u32[]', space=smem, size = 0x4, offset = 0x4, fixed_abs, tag = 'smem constant byte address 0x4 - core index']
  #allocation1 [shape = 'u32[144,128]{1,0:T(1,128)}', space=vmem, size = 0x12000, scoped, tag = 'internal scratch']
  #allocation2 [shape = 'f32[56,128]{1,0:T(8,128)}', space=vmem, size = 0x7000, scoped, tag = 'scratch operand']
  #allocation3 [shape = 'f32[56,256]{1,0:T(8,128)}', space=vmem, size = 0xe000, scoped, tag = 'scratch operand']
  #allocation4 [shape = 'f32[40,640]{1,0:T(8,128)}', space=vmem, size = 0x19000, scoped, tag = 'scratch operand']
  #allocation5 [shape = 'f32[40,768]{1,0:T(8,128)}', space=vmem, size = 0x1e000, scoped, tag = 'scratch operand']
  %s0 = inlined_call_operand.vmem [shape: f32[40,8], index: 0, kind: input, shape index: {}]
  %s1 = inlined_call_operand.vmem [shape: bf16[8,128], index: 1, kind: input, shape index: {}]
  %s2 = inlined_call_operand.vmem [shape: f32[1,128], index: 2, kind: input, shape index: {}]
  %s3 = inlined_call_operand.vmem [shape: bf16[640,256], index: 3, kind: input, shape index: {}]
  %s4 = inlined_call_operand.vmem [shape: f32[1,256], index: 4, kind: input, shape index: {}]
  %s5 = inlined_call_operand.vmem [shape: bf16[768,128], index: 5, kind: input, shape index: {}]
  %s6 = inlined_call_operand.vmem [shape: f32[1,128], index: 6, kind: input, shape index: {}]
  %s7 = inlined_call_operand.vmem [shape: f32[2,40], index: 7, kind: input, shape index: {}]
  %s8 = inlined_call_operand.vmem [shape: f32[128,5], index: 8, kind: input, shape index: {}]
  %s9 = inlined_call_operand.vmem [shape: f32[1,5], index: 9, kind: input, shape index: {}]
  %s10 = inlined_call_operand.hbm [shape: f32[2,5], index: 10, kind: output, shape index: {}]
  %s11 = sld [smem:[#allocation0]]
  $region50: #{fcn_forward.1} parent=0
    _
  %s13 = ssub.s32 1, %s11
  %s14 = scalar_select 0, %s13, %s11
  $region1: #{fcn_forward.1} parent=0
    #allocation6 [shape = 'u8[1024]{0}', space=vmem, size = 0x400, scoped, tag = 'output window, operand 0, single buffered']
    #allocation7 [shape = 's32[1]{0}', space=sflag, size = 0x4, scoped, tag = 'scoped memory for fcn_forward.1']
    %15 = vsyncpa [#allocation7], 0
    // Predicated region
    $region2: #{fcn_forward.1} parent=1 // pred_check
      _
    $region3: #{fcn_forward.1} parent=1 // pred_check_branch
      %17 = sbr.rel (0) target = $region5
    $region4: #{fcn_forward.1} parent=1 // pred_region
      _
    $region5: #{fcn_forward.1} parent=1 // pred_fallthru
      _
    // Predicated region
    $region6: #{fcn_forward.1} parent=1 // pred_check
      _
    $region7: #{fcn_forward.1} parent=1 // pred_check_branch
      %19 = sbr.rel (0) target = $region9
    $region8: #{fcn_forward.1} parent=1 // pred_region
      _
    $region9: #{fcn_forward.1} parent=1 // pred_fallthru
      _
    // Predicated region
    $region10: #{fcn_forward.1} parent=1 // pred_check
      _
    $region11: #{fcn_forward.1} parent=1 // pred_check_branch
      %21 = sbr.rel (0) target = $region13
    $region12: #{fcn_forward.1} parent=1 // pred_region
      _
    $region13: #{fcn_forward.1} parent=1 // pred_fallthru
      _
    // Predicated region
    $region14: #{fcn_forward.1} parent=1 // pred_check
      _
    $region15: #{fcn_forward.1} parent=1 // pred_check_branch
      %23 = sbr.rel (0) target = $region17
    $region16: #{fcn_forward.1} parent=1 // pred_region
      _
    $region17: #{fcn_forward.1} parent=1 // pred_fallthru
      _
    // Predicated region
    $region18: #{fcn_forward.1} parent=1 // pred_check
      _
    $region19: #{fcn_forward.1} parent=1 // pred_check_branch
      %25 = sbr.rel (0) target = $region21
    $region20: #{fcn_forward.1} parent=1 // pred_region
      _
    $region21: #{fcn_forward.1} parent=1 // pred_fallthru
      _
    // Predicated region
    $region22: #{fcn_forward.1} parent=1 // pred_check
      _
    $region23: #{fcn_forward.1} parent=1 // pred_check_branch
      %27 = sbr.rel (0) target = $region25
    $region24: #{fcn_forward.1} parent=1 // pred_region
      _
    $region25: #{fcn_forward.1} parent=1 // pred_fallthru
      _
    // Predicated region
    $region26: #{fcn_forward.1} parent=1 // pred_check
      _
    $region27: #{fcn_forward.1} parent=1 // pred_check_branch
      %29 = sbr.rel (0) target = $region29
    $region28: #{fcn_forward.1} parent=1 // pred_region
      _
    $region29: #{fcn_forward.1} parent=1 // pred_fallthru
      _
    // Predicated region
    $region30: #{fcn_forward.1} parent=1 // pred_check
      _
    $region31: #{fcn_forward.1} parent=1 // pred_check_branch
      %31 = sbr.rel (0) target = $region33
    $region32: #{fcn_forward.1} parent=1 // pred_region
      _
    $region33: #{fcn_forward.1} parent=1 // pred_fallthru
      _
    // Predicated region
    $region34: #{fcn_forward.1} parent=1 // pred_check
      _
    $region35: #{fcn_forward.1} parent=1 // pred_check_branch
      %33 = sbr.rel (0) target = $region37
    $region36: #{fcn_forward.1} parent=1 // pred_region
      _
    $region37: #{fcn_forward.1} parent=1 // pred_fallthru
      _
    // Predicated region
    $region38: #{fcn_forward.1} parent=1 // pred_check
      _
    $region39: #{fcn_forward.1} parent=1 // pred_check_branch
      %35 = sbr.rel (0) target = $region41
    $region40: #{fcn_forward.1} parent=1 // pred_region
      _
    $region41: #{fcn_forward.1} parent=1 // pred_fallthru
      _
    %36 = vst [vmem:[#allocation2] sm:$0xff] 0.0
    %37 = vst [vmem:[#allocation2 + $0x18] sm:$0xff] 0.0
    %38 = vst [vmem:[#allocation2 + $0x30] sm:$0xff] 0.0
    %39 = vst [vmem:[#allocation3] sm:$0xff] 0.0
    %40 = vst [vmem:[#allocation3 + $0x8] sm:$0xff] 0.0
    %41 = vst [vmem:[#allocation3 + $0x30] sm:$0xff] 0.0
    %42 = vst [vmem:[#allocation3 + $0x38] sm:$0xff] 0.0
    %43 = vst [vmem:[#allocation3 + $0x60] sm:$0xff] 0.0
    %44 = vst [vmem:[#allocation3 + $0x68] sm:$0xff] 0.0
    %v45 = vld [vmem:[%s0] sm:$0xff]
    %v46 = vld [vmem:[%s0 + $0x8] sm:$0xff]
    %v47 = vld [vmem:[%s0 + $0x10] sm:$0xff]
    %v48 = vld [vmem:[%s0 + $0x18] sm:$0xff]
    %v49 = vld [vmem:[%s0 + $0x20] sm:$0xff]
    %v50 = vld [vmem:[%s1] sm:$0xf]
    %v51 = vunpack.c.l.bf16 %v50
    %v52 = vld [vmem:[%s2] sm:$0x1]
    %v54 = vlaneseq
    %v55 = vshrl.u32 %v54, 7
    %v56 = vsub.s32 0, %v55
    %v57 = vrot.slane %v52, %v56
    %vm59 = vcmask 64512
    %v61 = vsel %vm59, %v45, 0
    %v64 = vsel %vm59, %v46, 0
    %v67 = vsel %vm59, %v47, 0
    %v70 = vsel %vm59, %v48, 0
    %v73 = vsel %vm59, %v49, 0
    %75 = vmatprep.subr.mxu0 0.0
    %76 = vmatpush1.msra.mxu0 %v51
    %77 = vmatprep.subr.mxu0 0.0
    %78 = vmatpush1.msra.mxu0 0.0
    %79 = vmatprep.subr.mxu0 0.0
    %80 = vmatpush1.msra.mxu0 0.0
    %81 = vmatprep.subr.mxu0 0.0
    %82 = vmatpush1.msra.mxu0 0.0
    %83 = vmatprep.subr.mxu0 0.0
    %84 = vmatpush1.msra.mxu0 0.0
    %85 = vmatprep.subr.mxu0 0.0
    %86 = vmatpush1.msra.mxu0 0.0
    %87 = vmatprep.subr.mxu0 0.0
    %88 = vmatpush1.msra.mxu0 0.0
    %89 = vmatprep.subr.mxu0 0.0
    %90 = vmatpush1.msra.mxu0 0.0
    %91 = vmatprep.subr.mxu0 0.0
    %92 = vmatpush1.msra.mxu0 0.0
    %93 = vmatprep.subr.mxu0 0.0
    %94 = vmatpush1.msra.mxu0 0.0
    %95 = vmatprep.subr.mxu0 0.0
    %96 = vmatpush1.msra.mxu0 0.0
    %97 = vmatprep.subr.mxu0 0.0
    %98 = vmatpush1.msra.mxu0 0.0
    %99 = vmatprep.subr.mxu0 0.0
    %100 = vmatpush1.msra.mxu0 0.0
    %101 = vmatprep.subr.mxu0 0.0
    %102 = vmatpush1.msra.mxu0 0.0
    %103 = vmatprep.subr.mxu0 0.0
    %104 = vmatpush1.msra.mxu0 0.0
    %105 = vmatprep.subr.mxu0 0.0
    %106 = vmatpush1.msra.mxu0 0.0
    %107 = vmatprep.subr.mxu0 0.0
    %108 = vmatpush1.msra.mxu0 0.0
    %109 = vmatprep.subr.mxu0 0.0
    %110 = vmatpush1.msra.mxu0 0.0
    %111 = vmatprep.subr.mxu0 0.0
    %112 = vmatpush1.msra.mxu0 0.0
    %113 = vmatprep.subr.mxu0 0.0
    %114 = vmatpush1.msra.mxu0 0.0
    %115 = vmatprep.subr.mxu0 0.0
    %116 = vmatpush1.msra.mxu0 0.0
    %117 = vmatprep.subr.mxu0 0.0
    %118 = vmatpush1.msra.mxu0 0.0
    %119 = vmatprep.subr.mxu0 0.0
    %120 = vmatpush1.msra.mxu0 0.0
    %121 = vmatprep.subr.mxu0 0.0
    %122 = vmatpush1.msra.mxu0 0.0
    %123 = vmatprep.subr.mxu0 0.0
    %124 = vmatpush1.msra.mxu0 0.0
    %125 = vmatprep.subr.mxu0 0.0
    %126 = vmatpush1.msra.mxu0 0.0
    %127 = vmatprep.subr.mxu0 0.0
    %128 = vmatpush1.msra.mxu0 0.0
    %129 = vmatprep.subr.mxu0 0.0
    %130 = vmatpush1.msra.mxu0 0.0
    %131 = vmatprep.subr.mxu0 0.0
    %132 = vmatpush1.msra.mxu0 0.0
    %133 = vmatprep.subr.mxu0 0.0
    %134 = vmatpush1.msra.mxu0 0.0
    %135 = vmatprep.subr.mxu0 0.0
    %136 = vmatpush1.msra.mxu0 0.0
    %137 = vmatprep.subr.mxu0 0.0
    %138 = vmatpush1.msra.mxu0 0.0
    %139 = vmatprep.mubr.f32.mxu0 0.0
    %140 = vmatmul.mubr.f32.gmra.mrb[0].mxu0 %v61
    %v141 = vpop.f32.mrb[0].mxu0
    %v142 = vadd.f32 %v57, %v141
    %v143 = vpop.f32.mrb[0].mxu0
    %144 = vmatprep.mubr.f32.mxu0 0.0
    %145 = vmatmul.mubr.f32.gmra.mrb[0].mxu0 %v64
    %v146 = vpop.f32.mrb[0].mxu0
    %v147 = vadd.f32 %v57, %v146
    %v148 = vpop.f32.mrb[0].mxu0
    %149 = vmatprep.mubr.f32.mxu0 0.0
    %150 = vmatmul.mubr.f32.gmra.mrb[0].mxu0 %v67
    %v151 = vpop.f32.mrb[0].mxu0
    %v152 = vpop.f32.mrb[0].mxu0
    %153 = vmatprep.mubr.f32.mxu0 0.0
    %154 = vmatmul.mubr.f32.gmra.mrb[0].mxu0 %v70
    %v155 = vpop.f32.mrb[0].mxu0
    %v156 = vadd.f32 %v57, %v155
    %v157 = vpop.f32.mrb[0].mxu0
    %158 = vmatprep.mubr.f32.mxu0 0.0
    %159 = vmatmul.mubr.f32.gmra.mrb[0].mxu0 %v73
    %v160 = vpop.f32.mrb[0].mxu0
    %v161 = vadd.f32 %v57, %v160
    %v162 = vpop.f32.mrb[0].mxu0
    %163 = vdwg.mxu0
    %v164 = vmax.f32 %v142, 0.0
    %v165 = vmax.f32 %v147, 0.0
    %v166 = vmax.f32 %v156, 0.0
    %v167 = vmax.f32 %v161, 0.0
    %168 = vst [vmem:[#allocation2 + $0x8] sm:$0xff] %v164
    %169 = vst [vmem:[#allocation2 + $0x10] sm:$0xff] %v165
    %170 = vst [vmem:[#allocation2 + $0x20] sm:$0xff] %v166
    %171 = vst [vmem:[#allocation2 + $0x28] sm:$0xff] %v167
    %v172 = vld [vmem:[#allocation2 + $0x6] sm:$0xff]
    %v173 = vld [vmem:[#allocation2 + $0xe] sm:$0xff]
    %v174 = vld [vmem:[#allocation2 + $0x16] sm:$0xff]
    %v175 = vld [vmem:[#allocation2 + $0x1e] sm:$0xff]
    %v176 = vld [vmem:[#allocation2 + $0x26] sm:$0xff]
    %177 = vst [vmem:[#allocation4] sm:$0xff] %v172
    %178 = vst [vmem:[#allocation4 + $0x28] sm:$0xff] %v173
    %179 = vst [vmem:[#allocation4 + $0x50] sm:$0xff] %v174
    %180 = vst [vmem:[#allocation4 + $0x78] sm:$0xff] %v175
    %181 = vst [vmem:[#allocation4 + $0xa0] sm:$0xff] %v176
    %v182 = vld [vmem:[#allocation2 + $0x7] sm:$0xff]
    %v183 = vld [vmem:[#allocation2 + $0xf] sm:$0xff]
    %v184 = vld [vmem:[#allocation2 + $0x17] sm:$0xff]
    %v185 = vld [vmem:[#allocation2 + $0x1f] sm:$0xff]
    %v186 = vld [vmem:[#allocation2 + $0x27] sm:$0xff]
    %187 = vst [vmem:[#allocation4 + $0x8] sm:$0xff] %v182
    %188 = vst [vmem:[#allocation4 + $0x30] sm:$0xff] %v183
    %189 = vst [vmem:[#allocation4 + $0x58] sm:$0xff] %v184
    %190 = vst [vmem:[#allocation4 + $0x80] sm:$0xff] %v185
    %191 = vst [vmem:[#allocation4 + $0xa8] sm:$0xff] %v186
    %v192 = vld [vmem:[#allocation2 + $0x8] sm:$0xff]
    %v193 = vld [vmem:[#allocation2 + $0x10] sm:$0xff]
    %v194 = vld [vmem:[#allocation2 + $0x18] sm:$0xff]
    %v195 = vld [vmem:[#allocation2 + $0x20] sm:$0xff]
    %v196 = vld [vmem:[#allocation2 + $0x28] sm:$0xff]
    %197 = vst [vmem:[#allocation4 + $0x10] sm:$0xff] %v192
    %198 = vst [vmem:[#allocation4 + $0x38] sm:$0xff] %v193
    %199 = vst [vmem:[#allocation4 + $0x60] sm:$0xff] %v194
    %200 = vst [vmem:[#allocation4 + $0x88] sm:$0xff] %v195
    %201 = vst [vmem:[#allocation4 + $0xb0] sm:$0xff] %v196
    %v202 = vld [vmem:[#allocation2 + $0x9] sm:$0xff]
    %v203 = vld [vmem:[#allocation2 + $0x11] sm:$0xff]
    %v204 = vld [vmem:[#allocation2 + $0x19] sm:$0xff]
    %v205 = vld [vmem:[#allocation2 + $0x21] sm:$0xff]
    %v206 = vld [vmem:[#allocation2 + $0x29] sm:$0xff]
    %207 = vst [vmem:[#allocation4 + $0x18] sm:$0xff] %v202
    %208 = vst [vmem:[#allocation4 + $0x40] sm:$0xff] %v203
    %209 = vst [vmem:[#allocation4 + $0x68] sm:$0xff] %v204
    %210 = vst [vmem:[#allocation4 + $0x90] sm:$0xff] %v205
    %211 = vst [vmem:[#allocation4 + $0xb8] sm:$0xff] %v206
    %v212 = vld [vmem:[#allocation2 + $0xa] sm:$0xff]
    %v213 = vld [vmem:[#allocation2 + $0x12] sm:$0xff]
    %v214 = vld [vmem:[#allocation2 + $0x1a] sm:$0xff]
    %v215 = vld [vmem:[#allocation2 + $0x22] sm:$0xff]
    %v216 = vld [vmem:[#allocation2 + $0x2a] sm:$0xff]
    %217 = vst [vmem:[#allocation4 + $0x20] sm:$0xff] %v212
    %218 = vst [vmem:[#allocation4 + $0x48] sm:$0xff] %v213
    %219 = vst [vmem:[#allocation4 + $0x70] sm:$0xff] %v214
    %220 = vst [vmem:[#allocation4 + $0x98] sm:$0xff] %v215
    %221 = vst [vmem:[#allocation4 + $0xc0] sm:$0xff] %v216
    %v222 = vld [vmem:[#allocation4] sm:$0xff]
    %v223 = vld [vmem:[#allocation4 + $0x8] sm:$0xff]
    %v224 = vld [vmem:[#allocation4 + $0x10] sm:$0xff]
    %v225 = vld [vmem:[#allocation4 + $0x18] sm:$0xff]
    %v226 = vld [vmem:[#allocation4 + $0x20] sm:$0xff]
    %v227 = vld [vmem:[#allocation4 + $0x28] sm:$0xff]
    %v228 = vld [vmem:[#allocation4 + $0x30] sm:$0xff]
    %v229 = vld [vmem:[#allocation4 + $0x38] sm:$0xff]
    %v230 = vld [vmem:[#allocation4 + $0x40] sm:$0xff]
    %v231 = vld [vmem:[#allocation4 + $0x48] sm:$0xff]
    %v232 = vld [vmem:[#allocation4 + $0x50] sm:$0xff]
    %v233 = vld [vmem:[#allocation4 + $0x58] sm:$0xff]
    %v234 = vld [vmem:[#allocation4 + $0x60] sm:$0xff]
    %v235 = vld [vmem:[#allocation4 + $0x68] sm:$0xff]
    %v236 = vld [vmem:[#allocation4 + $0x70] sm:$0xff]
    %v237 = vld [vmem:[#allocation4 + $0x78] sm:$0xff]
    %v238 = vld [vmem:[#allocation4 + $0x80] sm:$0xff]
    %v239 = vld [vmem:[#allocation4 + $0x88] sm:$0xff]
    %v240 = vld [vmem:[#allocation4 + $0x90] sm:$0xff]
    %v241 = vld [vmem:[#allocation4 + $0x98] sm:$0xff]
    %v242 = vld [vmem:[#allocation4 + $0xa0] sm:$0xff]
    %v243 = vld [vmem:[#allocation4 + $0xa8] sm:$0xff]
    %v244 = vld [vmem:[#allocation4 + $0xb0] sm:$0xff]
    %v245 = vld [vmem:[#allocation4 + $0xb8] sm:$0xff]
    %v246 = vld [vmem:[#allocation4 + $0xc0] sm:$0xff]
    %v247 = vld [vmem:[%s3] sm:$0xff]
    %v248 = vld [vmem:[%s3 + $0x8] sm:$0xff]
    %v249 = vld [vmem:[%s3 + $0x10] sm:$0xff]
    %v250 = vld [vmem:[%s3 + $0x18] sm:$0xff]
    %v251 = vld [vmem:[%s3 + $0x20] sm:$0xff]
    %v252 = vld [vmem:[%s3 + $0x28] sm:$0xff]
    %v253 = vld [vmem:[%s3 + $0x30] sm:$0xff]
    %v254 = vld [vmem:[%s3 + $0x38] sm:$0xff]
    %v255 = vld [vmem:[%s3 + $0x40] sm:$0xff]
    %v256 = vld [vmem:[%s3 + $0x48] sm:$0xff]
    %v257 = vld [vmem:[%s3 + $0x50] sm:$0xff]
    %v258 = vld [vmem:[%s3 + $0x58] sm:$0xff]
    %v259 = vld [vmem:[%s3 + $0x60] sm:$0xff]
    %v260 = vld [vmem:[%s3 + $0x68] sm:$0xff]
    %v261 = vld [vmem:[%s3 + $0x70] sm:$0xff]
    %v262 = vld [vmem:[%s3 + $0x78] sm:$0xff]
    %v263 = vld [vmem:[%s3 + $0x80] sm:$0xff]
    %v264 = vld [vmem:[%s3 + $0x88] sm:$0xff]
    %v265 = vld [vmem:[%s3 + $0x90] sm:$0xff]
    %v266 = vld [vmem:[%s3 + $0x98] sm:$0xff]
    %v267 = vld [vmem:[%s3 + $0xa0] sm:$0xff]
    %v268 = vld [vmem:[%s3 + $0xa8] sm:$0xff]
    %v269 = vld [vmem:[%s3 + $0xb0] sm:$0xff]
    %v270 = vld [vmem:[%s3 + $0xb8] sm:$0xff]
    %v271 = vld [vmem:[%s3 + $0xc0] sm:$0xff]
    %v272 = vld [vmem:[%s3 + $0xc8] sm:$0xff]
    %v273 = vld [vmem:[%s3 + $0xd0] sm:$0xff]
    %v274 = vld [vmem:[%s3 + $0xd8] sm:$0xff]
    %v275 = vld [vmem:[%s3 + $0xe0] sm:$0xff]
    %v276 = vld [vmem:[%s3 + $0xe8] sm:$0xff]
    %v277 = vld [vmem:[%s3 + $0xf0] sm:$0xff]
    %v278 = vld [vmem:[%s3 + $0xf8] sm:$0xff]
    %v279 = vld [vmem:[%s3 + $0x100] sm:$0xff]
    %v280 = vld [vmem:[%s3 + $0x108] sm:$0xff]
    %v281 = vld [vmem:[%s3 + $0x110] sm:$0xff]
    %v282 = vld [vmem:[%s3 + $0x118] sm:$0xff]
    %v283 = vld [vmem:[%s3 + $0x120] sm:$0xff]
    %v284 = vld [vmem:[%s3 + $0x128] sm:$0xff]
    %v285 = vld [vmem:[%s3 + $0x130] sm:$0xff]
    %v286 = vld [vmem:[%s3 + $0x138] sm:$0xff]
    %v287 = vld [vmem:[%s3 + $0x140] sm:$0xff]
    %v288 = vld [vmem:[%s3 + $0x148] sm:$0xff]
    %v289 = vld [vmem:[%s3 + $0x150] sm:$0xff]
    %v290 = vld [vmem:[%s3 + $0x158] sm:$0xff]
    %v291 = vld [vmem:[%s3 + $0x160] sm:$0xff]
    %v292 = vld [vmem:[%s3 + $0x168] sm:$0xff]
    %v293 = vld [vmem:[%s3 + $0x170] sm:$0xff]
    %v294 = vld [vmem:[%s3 + $0x178] sm:$0xff]
    %v295 = vld [vmem:[%s3 + $0x180] sm:$0xff]
    %v296 = vld [vmem:[%s3 + $0x188] sm:$0xff]
    %v297 = vld [vmem:[%s3 + $0x190] sm:$0xff]
    %v298 = vld [vmem:[%s3 + $0x198] sm:$0xff]
    %v299 = vld [vmem:[%s3 + $0x1a0] sm:$0xff]
    %v300 = vld [vmem:[%s3 + $0x1a8] sm:$0xff]
    %v301 = vld [vmem:[%s3 + $0x1b0] sm:$0xff]
    %v302 = vld [vmem:[%s3 + $0x1b8] sm:$0xff]
    %v303 = vld [vmem:[%s3 + $0x1c0] sm:$0xff]
    %v304 = vld [vmem:[%s3 + $0x1c8] sm:$0xff]
    %v305 = vld [vmem:[%s3 + $0x1d0] sm:$0xff]
    %v306 = vld [vmem:[%s3 + $0x1d8] sm:$0xff]
    %v307 = vld [vmem:[%s3 + $0x1e0] sm:$0xff]
    %v308 = vld [vmem:[%s3 + $0x1e8] sm:$0xff]
    %v309 = vld [vmem:[%s3 + $0x1f0] sm:$0xff]
    %v310 = vld [vmem:[%s3 + $0x1f8] sm:$0xff]
    %v311 = vld [vmem:[%s3 + $0x200] sm:$0xff]
    %v312 = vld [vmem:[%s3 + $0x208] sm:$0xff]
    %v313 = vld [vmem:[%s3 + $0x210] sm:$0xff]
    %v314 = vld [vmem:[%s3 + $0x218] sm:$0xff]
    %v315 = vld [vmem:[%s3 + $0x220] sm:$0xff]
    %v316 = vld [vmem:[%s3 + $0x228] sm:$0xff]
    %v317 = vld [vmem:[%s3 + $0x230] sm:$0xff]
    %v318 = vld [vmem:[%s3 + $0x238] sm:$0xff]
    %v319 = vld [vmem:[%s3 + $0x240] sm:$0xff]
    %v320 = vld [vmem:[%s3 + $0x248] sm:$0xff]
    %v321 = vld [vmem:[%s3 + $0x250] sm:$0xff]
    %v322 = vld [vmem:[%s3 + $0x258] sm:$0xff]
    %v323 = vld [vmem:[%s3 + $0x260] sm:$0xff]
    %v324 = vld [vmem:[%s3 + $0x268] sm:$0xff]
    %v325 = vld [vmem:[%s3 + $0x270] sm:$0xff]
    %v326 = vld [vmem:[%s3 + $0x278] sm:$0xff]
    %v327 = vunpack.c.l.bf16 %v247
    %v328 = vunpack.c.h.bf16 %v247
    %v329 = vunpack.c.l.bf16 %v248
    %v330 = vunpack.c.h.bf16 %v248
    %v331 = vunpack.c.l.bf16 %v249
    %v332 = vunpack.c.h.bf16 %v249
    %v333 = vunpack.c.l.bf16 %v250
    %v334 = vunpack.c.h.bf16 %v250
    %v335 = vunpack.c.l.bf16 %v251
    %v336 = vunpack.c.h.bf16 %v251
    %v337 = vunpack.c.l.bf16 %v252
    %v338 = vunpack.c.h.bf16 %v252
    %v339 = vunpack.c.l.bf16 %v253
    %v340 = vunpack.c.h.bf16 %v253
    %v341 = vunpack.c.l.bf16 %v254
    %v342 = vunpack.c.h.bf16 %v254
    %v343 = vunpack.c.l.bf16 %v255
    %v344 = vunpack.c.h.bf16 %v255
    %v345 = vunpack.c.l.bf16 %v256
    %v346 = vunpack.c.h.bf16 %v256
    %v347 = vunpack.c.l.bf16 %v257
    %v348 = vunpack.c.h.bf16 %v257
    %v349 = vunpack.c.l.bf16 %v258
    %v350 = vunpack.c.h.bf16 %v258
    %v351 = vunpack.c.l.bf16 %v259
    %v352 = vunpack.c.h.bf16 %v259
    %v353 = vunpack.c.l.bf16 %v260
    %v354 = vunpack.c.h.bf16 %v260
    %v355 = vunpack.c.l.bf16 %v261
    %v356 = vunpack.c.h.bf16 %v261
    %v357 = vunpack.c.l.bf16 %v262
    %v358 = vunpack.c.h.bf16 %v262
    %v359 = vunpack.c.l.bf16 %v263
    %v360 = vunpack.c.h.bf16 %v263
    %v361 = vunpack.c.l.bf16 %v264
    %v362 = vunpack.c.h.bf16 %v264
    %v363 = vunpack.c.l.bf16 %v265
    %v364 = vunpack.c.h.bf16 %v265
    %v365 = vunpack.c.l.bf16 %v266
    %v366 = vunpack.c.h.bf16 %v266
    %v367 = vunpack.c.l.bf16 %v267
    %v368 = vunpack.c.h.bf16 %v267
    %v369 = vunpack.c.l.bf16 %v268
    %v370 = vunpack.c.h.bf16 %v268
    %v371 = vunpack.c.l.bf16 %v269
    %v372 = vunpack.c.h.bf16 %v269
    %v373 = vunpack.c.l.bf16 %v270
    %v374 = vunpack.c.h.bf16 %v270
    %v375 = vunpack.c.l.bf16 %v271
    %v376 = vunpack.c.h.bf16 %v271
    %v377 = vunpack.c.l.bf16 %v272
    %v378 = vunpack.c.h.bf16 %v272
    %v379 = vunpack.c.l.bf16 %v273
    %v380 = vunpack.c.h.bf16 %v273
    %v381 = vunpack.c.l.bf16 %v274
    %v382 = vunpack.c.h.bf16 %v274
    %v383 = vunpack.c.l.bf16 %v275
    %v384 = vunpack.c.h.bf16 %v275
    %v385 = vunpack.c.l.bf16 %v276
    %v386 = vunpack.c.h.bf16 %v276
    %v387 = vunpack.c.l.bf16 %v277
    %v388 = vunpack.c.h.bf16 %v277
    %v389 = vunpack.c.l.bf16 %v278
    %v390 = vunpack.c.h.bf16 %v278
    %v391 = vunpack.c.l.bf16 %v279
    %v392 = vunpack.c.h.bf16 %v279
    %v393 = vunpack.c.l.bf16 %v280
    %v394 = vunpack.c.h.bf16 %v280
    %v395 = vunpack.c.l.bf16 %v281
    %v396 = vunpack.c.h.bf16 %v281
    %v397 = vunpack.c.l.bf16 %v282
    %v398 = vunpack.c.h.bf16 %v282
    %v399 = vunpack.c.l.bf16 %v283
    %v400 = vunpack.c.h.bf16 %v283
    %v401 = vunpack.c.l.bf16 %v284
    %v402 = vunpack.c.h.bf16 %v284
    %v403 = vunpack.c.l.bf16 %v285
    %v404 = vunpack.c.h.bf16 %v285
    %v405 = vunpack.c.l.bf16 %v286
    %v406 = vunpack.c.h.bf16 %v286
    %v407 = vunpack.c.l.bf16 %v287
    %v408 = vunpack.c.h.bf16 %v287
    %v409 = vunpack.c.l.bf16 %v288
    %v410 = vunpack.c.h.bf16 %v288
    %v411 = vunpack.c.l.bf16 %v289
    %v412 = vunpack.c.h.bf16 %v289
    %v413 = vunpack.c.l.bf16 %v290
    %v414 = vunpack.c.h.bf16 %v290
    %v415 = vunpack.c.l.bf16 %v291
    %v416 = vunpack.c.h.bf16 %v291
    %v417 = vunpack.c.l.bf16 %v292
    %v418 = vunpack.c.h.bf16 %v292
    %v419 = vunpack.c.l.bf16 %v293
    %v420 = vunpack.c.h.bf16 %v293
    %v421 = vunpack.c.l.bf16 %v294
    %v422 = vunpack.c.h.bf16 %v294
    %v423 = vunpack.c.l.bf16 %v295
    %v424 = vunpack.c.h.bf16 %v295
    %v425 = vunpack.c.l.bf16 %v296
    %v426 = vunpack.c.h.bf16 %v296
    %v427 = vunpack.c.l.bf16 %v297
    %v428 = vunpack.c.h.bf16 %v297
    %v429 = vunpack.c.l.bf16 %v298
    %v430 = vunpack.c.h.bf16 %v298
    %v431 = vunpack.c.l.bf16 %v299
    %v432 = vunpack.c.h.bf16 %v299
    %v433 = vunpack.c.l.bf16 %v300
    %v434 = vunpack.c.h.bf16 %v300
    %v435 = vunpack.c.l.bf16 %v301
    %v436 = vunpack.c.h.bf16 %v301
    %v437 = vunpack.c.l.bf16 %v302
    %v438 = vunpack.c.h.bf16 %v302
    %v439 = vunpack.c.l.bf16 %v303
    %v440 = vunpack.c.h.bf16 %v303
    %v441 = vunpack.c.l.bf16 %v304
    %v442 = vunpack.c.h.bf16 %v304
    %v443 = vunpack.c.l.bf16 %v305
    %v444 = vunpack.c.h.bf16 %v305
    %v445 = vunpack.c.l.bf16 %v306
    %v446 = vunpack.c.h.bf16 %v306
    %v447 = vunpack.c.l.bf16 %v307
    %v448 = vunpack.c.h.bf16 %v307
    %v449 = vunpack.c.l.bf16 %v308
    %v450 = vunpack.c.h.bf16 %v308
    %v451 = vunpack.c.l.bf16 %v309
    %v452 = vunpack.c.h.bf16 %v309
    %v453 = vunpack.c.l.bf16 %v310
    %v454 = vunpack.c.h.bf16 %v310
    %v455 = vunpack.c.l.bf16 %v311
    %v456 = vunpack.c.h.bf16 %v311
    %v457 = vunpack.c.l.bf16 %v312
    %v458 = vunpack.c.h.bf16 %v312
    %v459 = vunpack.c.l.bf16 %v313
    %v460 = vunpack.c.h.bf16 %v313
    %v461 = vunpack.c.l.bf16 %v314
    %v462 = vunpack.c.h.bf16 %v314
    %v463 = vunpack.c.l.bf16 %v315
    %v464 = vunpack.c.h.bf16 %v315
    %v465 = vunpack.c.l.bf16 %v316
    %v466 = vunpack.c.h.bf16 %v316
    %v467 = vunpack.c.l.bf16 %v317
    %v468 = vunpack.c.h.bf16 %v317
    %v469 = vunpack.c.l.bf16 %v318
    %v470 = vunpack.c.h.bf16 %v318
    %v471 = vunpack.c.l.bf16 %v319
    %v472 = vunpack.c.h.bf16 %v319
    %v473 = vunpack.c.l.bf16 %v320
    %v474 = vunpack.c.h.bf16 %v320
    %v475 = vunpack.c.l.bf16 %v321
    %v476 = vunpack.c.h.bf16 %v321
    %v477 = vunpack.c.l.bf16 %v322
    %v478 = vunpack.c.h.bf16 %v322
    %v479 = vunpack.c.l.bf16 %v323
    %v480 = vunpack.c.h.bf16 %v323
    %v481 = vunpack.c.l.bf16 %v324
    %v482 = vunpack.c.h.bf16 %v324
    %v483 = vunpack.c.l.bf16 %v325
    %v484 = vunpack.c.h.bf16 %v325
    %v485 = vunpack.c.l.bf16 %v326
    %v486 = vunpack.c.h.bf16 %v326
    %v487 = vld [vmem:[%s4] sm:$0x3]
    %v489 = vlaneseq
    %v490 = vshrl.u32 %v489, 7
    %v491 = vsub.s32 0, %v490
    %v492 = vrot.slane %v487, %v491
    %v493 = vlaneseq
    %v494 = vshrl.u32 %v493, 7
    %v495 = vsub.s32 1, %v494
    %v496 = vrot.slane %v487, %v495
    %499 = vmatprep.subr.mxu0 %v328
    %500 = vmatpush1.msra.mxu0 %v327
    %501 = vmatprep.subr.mxu0 %v330
    %502 = vmatpush1.msra.mxu0 %v329
    %503 = vmatprep.subr.mxu0 %v332
    %504 = vmatpush1.msra.mxu0 %v331
    %505 = vmatprep.subr.mxu0 %v334
    %506 = vmatpush1.msra.mxu0 %v333
    %507 = vmatprep.subr.mxu0 %v336
    %508 = vmatpush1.msra.mxu0 %v335
    %509 = vmatprep.subr.mxu0 %v338
    %510 = vmatpush1.msra.mxu0 %v337
    %511 = vmatprep.subr.mxu0 %v340
    %512 = vmatpush1.msra.mxu0 %v339
    %513 = vmatprep.subr.mxu0 %v342
    %514 = vmatpush1.msra.mxu0 %v341
    %515 = vmatprep.subr.mxu0 %v344
    %516 = vmatpush1.msra.mxu0 %v343
    %517 = vmatprep.subr.mxu0 %v346
    %518 = vmatpush1.msra.mxu0 %v345
    %519 = vmatprep.subr.mxu0 %v348
    %520 = vmatpush1.msra.mxu0 %v347
    %521 = vmatprep.subr.mxu0 %v350
    %522 = vmatpush1.msra.mxu0 %v349
    %523 = vmatprep.subr.mxu0 %v352
    %524 = vmatpush1.msra.mxu0 %v351
    %525 = vmatprep.subr.mxu0 %v354
    %526 = vmatpush1.msra.mxu0 %v353
    %527 = vmatprep.subr.mxu0 %v356
    %528 = vmatpush1.msra.mxu0 %v355
    %529 = vmatprep.subr.mxu0 %v358
    %530 = vmatpush1.msra.mxu0 %v357
    %531 = vmatprep.subr.mxu0 %v360
    %532 = vmatpush1.msra.mxu0 %v359
    %533 = vmatprep.subr.mxu0 %v362
    %534 = vmatpush1.msra.mxu0 %v361
    %535 = vmatprep.subr.mxu0 %v364
    %536 = vmatpush1.msra.mxu0 %v363
    %537 = vmatprep.subr.mxu0 %v366
    %538 = vmatpush1.msra.mxu0 %v365
    %539 = vmatprep.subr.mxu0 %v368
    %540 = vmatpush1.msra.mxu0 %v367
    %541 = vmatprep.subr.mxu0 %v370
    %542 = vmatpush1.msra.mxu0 %v369
    %543 = vmatprep.subr.mxu0 %v372
    %544 = vmatpush1.msra.mxu0 %v371
    %545 = vmatprep.subr.mxu0 %v374
    %546 = vmatpush1.msra.mxu0 %v373
    %547 = vmatprep.subr.mxu0 %v376
    %548 = vmatpush1.msra.mxu0 %v375
    %549 = vmatprep.subr.mxu0 %v378
    %550 = vmatpush1.msra.mxu0 %v377
    %551 = vmatprep.subr.mxu0 %v380
    %552 = vmatpush1.msra.mxu0 %v379
    %553 = vmatprep.subr.mxu0 %v382
    %554 = vmatpush1.msra.mxu0 %v381
    %555 = vmatprep.subr.mxu0 %v384
    %556 = vmatpush1.msra.mxu0 %v383
    %557 = vmatprep.subr.mxu0 %v386
    %558 = vmatpush1.msra.mxu0 %v385
    %559 = vmatprep.subr.mxu0 %v388
    %560 = vmatpush1.msra.mxu0 %v387
    %561 = vmatprep.subr.mxu0 %v390
    %562 = vmatpush1.msra.mxu0 %v389
    %563 = vmatprep.mubr.f32.mxu0 %v223
    %564 = vmatmul.mubr.f32.gmra.mrb[0].mxu0 %v222
    %v565 = vpop.f32.mrb[0].mxu0
    %v566 = vadd.f32 %v492, %v565
    %v567 = vpop.f32.mrb[0].mxu0
    %v568 = vadd.f32 %v496, %v567
    %569 = vmatprep.mubr.f32.mxu0 %v228
    %570 = vmatmul.mubr.f32.gmra.mrb[0].mxu0 %v227
    %v571 = vpop.f32.mrb[0].mxu0
    %v572 = vadd.f32 %v492, %v571
    %v573 = vpop.f32.mrb[0].mxu0
    %v574 = vadd.f32 %v496, %v573
    %575 = vmatprep.mubr.f32.mxu0 %v233
    %576 = vmatmul.mubr.f32.gmra.mrb[0].mxu0 %v232
    %v577 = vpop.f32.mrb[0].mxu0
    %v578 = vpop.f32.mrb[0].mxu0
    %579 = vmatprep.mubr.f32.mxu0 %v238
    %580 = vmatmul.mubr.f32.gmra.mrb[0].mxu0 %v237
    %v581 = vpop.f32.mrb[0].mxu0
    %v582 = vadd.f32 %v492, %v581
    %v583 = vpop.f32.mrb[0].mxu0
    %v584 = vadd.f32 %v496, %v583
    %585 = vmatprep.mubr.f32.mxu0 %v243
    %586 = vmatmul.mubr.f32.gmra.mrb[0].mxu0 %v242
    %v587 = vpop.f32.mrb[0].mxu0
    %v588 = vadd.f32 %v492, %v587
    %v589 = vpop.f32.mrb[0].mxu0
    %v590 = vadd.f32 %v496, %v589
    %591 = vdwg.mxu0
    %592 = vmatprep.subr.mxu0 %v392
    %593 = vmatpush1.msra.mxu0 %v391
    %594 = vmatprep.subr.mxu0 %v394
    %595 = vmatpush1.msra.mxu0 %v393
    %596 = vmatprep.subr.mxu0 %v396
    %597 = vmatpush1.msra.mxu0 %v395
    %598 = vmatprep.subr.mxu0 %v398
    %599 = vmatpush1.msra.mxu0 %v397
    %600 = vmatprep.subr.mxu0 %v400
    %601 = vmatpush1.msra.mxu0 %v399
    %602 = vmatprep.subr.mxu0 %v402
    %603 = vmatpush1.msra.mxu0 %v401
    %604 = vmatprep.subr.mxu0 %v404
    %605 = vmatpush1.msra.mxu0 %v403
    %606 = vmatprep.subr.mxu0 %v406
    %607 = vmatpush1.msra.mxu0 %v405
    %608 = vmatprep.subr.mxu0 %v408
    %609 = vmatpush1.msra.mxu0 %v407
    %610 = vmatprep.subr.mxu0 %v410
    %611 = vmatpush1.msra.mxu0 %v409
    %612 = vmatprep.subr.mxu0 %v412
    %613 = vmatpush1.msra.mxu0 %v411
    %614 = vmatprep.subr.mxu0 %v414
    %615 = vmatpush1.msra.mxu0 %v413
    %616 = vmatprep.subr.mxu0 %v416
    %617 = vmatpush1.msra.mxu0 %v415
    %618 = vmatprep.subr.mxu0 %v418
    %619 = vmatpush1.msra.mxu0 %v417
    %620 = vmatprep.subr.mxu0 %v420
    %621 = vmatpush1.msra.mxu0 %v419
    %622 = vmatprep.subr.mxu0 %v422
    %623 = vmatpush1.msra.mxu0 %v421
    %624 = vmatprep.subr.mxu0 %v424
    %625 = vmatpush1.msra.mxu0 %v423
    %626 = vmatprep.subr.mxu0 %v426
    %627 = vmatpush1.msra.mxu0 %v425
    %628 = vmatprep.subr.mxu0 %v428
    %629 = vmatpush1.msra.mxu0 %v427
    %630 = vmatprep.subr.mxu0 %v430
    %631 = vmatpush1.msra.mxu0 %v429
    %632 = vmatprep.subr.mxu0 %v432
    %633 = vmatpush1.msra.mxu0 %v431
    %634 = vmatprep.subr.mxu0 %v434
    %635 = vmatpush1.msra.mxu0 %v433
    %636 = vmatprep.subr.mxu0 %v436
    %637 = vmatpush1.msra.mxu0 %v435
    %638 = vmatprep.subr.mxu0 %v438
    %639 = vmatpush1.msra.mxu0 %v437
    %640 = vmatprep.subr.mxu0 %v440
    %641 = vmatpush1.msra.mxu0 %v439
    %642 = vmatprep.subr.mxu0 %v442
    %643 = vmatpush1.msra.mxu0 %v441
    %644 = vmatprep.subr.mxu0 %v444
    %645 = vmatpush1.msra.mxu0 %v443
    %646 = vmatprep.subr.mxu0 %v446
    %647 = vmatpush1.msra.mxu0 %v445
    %648 = vmatprep.subr.mxu0 %v448
    %649 = vmatpush1.msra.mxu0 %v447
    %650 = vmatprep.subr.mxu0 %v450
    %651 = vmatpush1.msra.mxu0 %v449
    %652 = vmatprep.subr.mxu0 %v452
    %653 = vmatpush1.msra.mxu0 %v451
    %654 = vmatprep.subr.mxu0 %v454
    %655 = vmatpush1.msra.mxu0 %v453
    %656 = vmatprep.mubr.f32.mxu0 %v225
    %657 = vmatmul.mubr.f32.gmra.mrb[0].mxu0 %v224
    %v658 = vpop.f32.mrb[0].mxu0
    %v659 = vadd.f32 %v566, %v658
    %v660 = vpop.f32.mrb[0].mxu0
    %v661 = vadd.f32 %v568, %v660
    %662 = vmatprep.mubr.f32.mxu0 %v230
    %663 = vmatmul.mubr.f32.gmra.mrb[0].mxu0 %v229
    %v664 = vpop.f32.mrb[0].mxu0
    %v665 = vadd.f32 %v572, %v664
    %v666 = vpop.f32.mrb[0].mxu0
    %v667 = vadd.f32 %v574, %v666
    %668 = vmatprep.mubr.f32.mxu0 %v235
    %669 = vmatmul.mubr.f32.gmra.mrb[0].mxu0 %v234
    %v670 = vpop.f32.mrb[0].mxu0
    %v671 = vpop.f32.mrb[0].mxu0
    %672 = vmatprep.mubr.f32.mxu0 %v240
    %673 = vmatmul.mubr.f32.gmra.mrb[0].mxu0 %v239
    %v674 = vpop.f32.mrb[0].mxu0
    %v675 = vadd.f32 %v582, %v674
    %v676 = vpop.f32.mrb[0].mxu0
    %v677 = vadd.f32 %v584, %v676
    %678 = vmatprep.mubr.f32.mxu0 %v245
    %679 = vmatmul.mubr.f32.gmra.mrb[0].mxu0 %v244
    %v680 = vpop.f32.mrb[0].mxu0
    %v681 = vadd.f32 %v588, %v680
    %v682 = vpop.f32.mrb[0].mxu0
    %v683 = vadd.f32 %v590, %v682
    %684 = vdwg.mxu0
    %685 = vmatprep.subr.mxu0 %v456
    %686 = vmatpush1.msra.mxu0 %v455
    %687 = vmatprep.subr.mxu0 %v458
    %688 = vmatpush1.msra.mxu0 %v457
    %689 = vmatprep.subr.mxu0 %v460
    %690 = vmatpush1.msra.mxu0 %v459
    %691 = vmatprep.subr.mxu0 %v462
    %692 = vmatpush1.msra.mxu0 %v461
    %693 = vmatprep.subr.mxu0 %v464
    %694 = vmatpush1.msra.mxu0 %v463
    %695 = vmatprep.subr.mxu0 %v466
    %696 = vmatpush1.msra.mxu0 %v465
    %697 = vmatprep.subr.mxu0 %v468
    %698 = vmatpush1.msra.mxu0 %v467
    %699 = vmatprep.subr.mxu0 %v470
    %700 = vmatpush1.msra.mxu0 %v469
    %701 = vmatprep.subr.mxu0 %v472
    %702 = vmatpush1.msra.mxu0 %v471
    %703 = vmatprep.subr.mxu0 %v474
    %704 = vmatpush1.msra.mxu0 %v473
    %705 = vmatprep.subr.mxu0 %v476
    %706 = vmatpush1.msra.mxu0 %v475
    %707 = vmatprep.subr.mxu0 %v478
    %708 = vmatpush1.msra.mxu0 %v477
    %709 = vmatprep.subr.mxu0 %v480
    %710 = vmatpush1.msra.mxu0 %v479
    %711 = vmatprep.subr.mxu0 %v482
    %712 = vmatpush1.msra.mxu0 %v481
    %713 = vmatprep.subr.mxu0 %v484
    %714 = vmatpush1.msra.mxu0 %v483
    %715 = vmatprep.subr.mxu0 %v486
    %716 = vmatpush1.msra.mxu0 %v485
    %717 = vmatprep.subr.mxu0 0.0
    %718 = vmatpush1.msra.mxu0 0.0
    %719 = vmatprep.subr.mxu0 0.0
    %720 = vmatpush1.msra.mxu0 0.0
    %721 = vmatprep.subr.mxu0 0.0
    %722 = vmatpush1.msra.mxu0 0.0
    %723 = vmatprep.subr.mxu0 0.0
    %724 = vmatpush1.msra.mxu0 0.0
    %725 = vmatprep.subr.mxu0 0.0
    %726 = vmatpush1.msra.mxu0 0.0
    %727 = vmatprep.subr.mxu0 0.0
    %728 = vmatpush1.msra.mxu0 0.0
    %729 = vmatprep.subr.mxu0 0.0
    %730 = vmatpush1.msra.mxu0 0.0
    %731 = vmatprep.subr.mxu0 0.0
    %732 = vmatpush1.msra.mxu0 0.0
    %733 = vmatprep.subr.mxu0 0.0
    %734 = vmatpush1.msra.mxu0 0.0
    %735 = vmatprep.subr.mxu0 0.0
    %736 = vmatpush1.msra.mxu0 0.0
    %737 = vmatprep.subr.mxu0 0.0
    %738 = vmatpush1.msra.mxu0 0.0
    %739 = vmatprep.subr.mxu0 0.0
    %740 = vmatpush1.msra.mxu0 0.0
    %741 = vmatprep.subr.mxu0 0.0
    %742 = vmatpush1.msra.mxu0 0.0
    %743 = vmatprep.subr.mxu0 0.0
    %744 = vmatpush1.msra.mxu0 0.0
    %745 = vmatprep.subr.mxu0 0.0
    %746 = vmatpush1.msra.mxu0 0.0
    %747 = vmatprep.subr.mxu0 0.0
    %748 = vmatpush1.msra.mxu0 0.0
    %749 = vmatprep.mubr.f32.mxu0 0.0
    %750 = vmatmul.mubr.f32.gmra.mrb[0].mxu0 %v226
    %v751 = vpop.f32.mrb[0].mxu0
    %v752 = vadd.f32 %v659, %v751
    %v753 = vpop.f32.mrb[0].mxu0
    %v754 = vadd.f32 %v661, %v753
    %755 = vmatprep.mubr.f32.mxu0 0.0
    %756 = vmatmul.mubr.f32.gmra.mrb[0].mxu0 %v231
    %v757 = vpop.f32.mrb[0].mxu0
    %v758 = vadd.f32 %v665, %v757
    %v759 = vpop.f32.mrb[0].mxu0
    %v760 = vadd.f32 %v667, %v759
    %761 = vmatprep.mubr.f32.mxu0 0.0
    %762 = vmatmul.mubr.f32.gmra.mrb[0].mxu0 %v236
    %v763 = vpop.f32.mrb[0].mxu0
    %v764 = vpop.f32.mrb[0].mxu0
    %765 = vmatprep.mubr.f32.mxu0 0.0
    %766 = vmatmul.mubr.f32.gmra.mrb[0].mxu0 %v241
    %v767 = vpop.f32.mrb[0].mxu0
    %v768 = vadd.f32 %v675, %v767
    %v769 = vpop.f32.mrb[0].mxu0
    %v770 = vadd.f32 %v677, %v769
    %771 = vmatprep.mubr.f32.mxu0 0.0
    %772 = vmatmul.mubr.f32.gmra.mrb[0].mxu0 %v246
    %v773 = vpop.f32.mrb[0].mxu0
    %v774 = vadd.f32 %v681, %v773
    %v775 = vpop.f32.mrb[0].mxu0
    %v776 = vadd.f32 %v683, %v775
    %777 = vdwg.mxu0
    %v778 = vmax.f32 %v752, 0.0
    %v779 = vmax.f32 %v754, 0.0
    %v780 = vmax.f32 %v758, 0.0
    %v781 = vmax.f32 %v760, 0.0
    %v782 = vmax.f32 %v768, 0.0
    %v783 = vmax.f32 %v770, 0.0
    %v784 = vmax.f32 %v774, 0.0
    %v785 = vmax.f32 %v776, 0.0
    %786 = vst [vmem:[#allocation3 + $0x10] sm:$0xff] %v778
    %787 = vst [vmem:[#allocation3 + $0x18] sm:$0xff] %v779
    %788 = vst [vmem:[#allocation3 + $0x20] sm:$0xff] %v780
    %789 = vst [vmem:[#allocation3 + $0x28] sm:$0xff] %v781
    %790 = vst [vmem:[#allocation3 + $0x40] sm:$0xff] %v782
    %791 = vst [vmem:[#allocation3 + $0x48] sm:$0xff] %v783
    %792 = vst [vmem:[#allocation3 + $0x50] sm:$0xff] %v784
    %793 = vst [vmem:[#allocation3 + $0x58] sm:$0xff] %v785
    %v794 = vld [vmem:[#allocation3] sm:$0x80]
    %v795 = vld [vmem:[#allocation3 + $0x8] sm:$0x80]
    %v796 = vld [vmem:[#allocation3 + $0x10] sm:$0xff]
    %v797 = vld [vmem:[#allocation3 + $0x18] sm:$0xff]
    %v798 = vld [vmem:[#allocation3 + $0x20] sm:$0xff]
    %v799 = vld [vmem:[#allocation3 + $0x28] sm:$0xff]
    %v800 = vld [vmem:[#allocation3 + $0x30] sm:$0xff]
    %v801 = vld [vmem:[#allocation3 + $0x38] sm:$0xff]
    %v802 = vld [vmem:[#allocation3 + $0x40] sm:$0xff]
    %v803 = vld [vmem:[#allocation3 + $0x48] sm:$0xff]
    %v804 = vld [vmem:[#allocation3 + $0x50] sm:$0x7f]
    %v805 = vld [vmem:[#allocation3 + $0x58] sm:$0x7f]
    %vm818 = vcmask 1040384
    %v819 = vrot.slane %v794, 7
    %v820 = vrot.slane %v796, 7
    %v821 = vsel %vm818, %v819, %v820
    %v822 = vrot.slane %v795, 7
    %v823 = vrot.slane %v797, 7
    %v824 = vsel %vm818, %v822, %v823
    %v825 = vrot.slane %v798, 7
    %v826 = vsel %vm818, %v820, %v825
    %v827 = vrot.slane %v799, 7
    %v828 = vsel %vm818, %v823, %v827
    %v829 = vrot.slane %v800, 7
    %v830 = vsel %vm818, %v825, %v829
    %v831 = vrot.slane %v801, 7
    %v832 = vsel %vm818, %v827, %v831
    %v833 = vrot.slane %v802, 7
    %v834 = vsel %vm818, %v829, %v833
    %v835 = vrot.slane %v803, 7
    %v836 = vsel %vm818, %v831, %v835
    %v837 = vrot.slane %v804, 7
    %v838 = vsel %vm818, %v833, %v837
    %v839 = vrot.slane %v805, 7
    %v840 = vsel %vm818, %v835, %v839
    %851 = vst [vmem:[#allocation5] sm:$0xff] %v821
    %852 = vst [vmem:[#allocation5 + $0x8] sm:$0xff] %v824
    %853 = vst [vmem:[#allocation5 + $0x30] sm:$0xff] %v826
    %854 = vst [vmem:[#allocation5 + $0x38] sm:$0xff] %v828
    %855 = vst [vmem:[#allocation5 + $0x60] sm:$0xff] %v830
    %856 = vst [vmem:[#allocation5 + $0x68] sm:$0xff] %v832
    %857 = vst [vmem:[#allocation5 + $0x90] sm:$0xff] %v834
    %858 = vst [vmem:[#allocation5 + $0x98] sm:$0xff] %v836
    %859 = vst [vmem:[#allocation5 + $0xc0] sm:$0xff] %v838
    %860 = vst [vmem:[#allocation5 + $0xc8] sm:$0xff] %v840
    %v861 = vld [vmem:[#allocation3 + $0x10] sm:$0xff]
    %v862 = vld [vmem:[#allocation3 + $0x18] sm:$0xff]
    %v863 = vld [vmem:[#allocation3 + $0x20] sm:$0xff]
    %v864 = vld [vmem:[#allocation3 + $0x28] sm:$0xff]
    %v865 = vld [vmem:[#allocation3 + $0x30] sm:$0xff]
    %v866 = vld [vmem:[#allocation3 + $0x38] sm:$0xff]
    %v867 = vld [vmem:[#allocation3 + $0x40] sm:$0xff]
    %v868 = vld [vmem:[#allocation3 + $0x48] sm:$0xff]
    %v869 = vld [vmem:[#allocation3 + $0x50] sm:$0xff]
    %v870 = vld [vmem:[#allocation3 + $0x58] sm:$0xff]
    %871 = vst [vmem:[#allocation5 + $0x10] sm:$0xff] %v861
    %872 = vst [vmem:[#allocation5 + $0x18] sm:$0xff] %v862
    %873 = vst [vmem:[#allocation5 + $0x40] sm:$0xff] %v863
    %874 = vst [vmem:[#allocation5 + $0x48] sm:$0xff] %v864
    %875 = vst [vmem:[#allocation5 + $0x70] sm:$0xff] %v865
    %876 = vst [vmem:[#allocation5 + $0x78] sm:$0xff] %v866
    %877 = vst [vmem:[#allocation5 + $0xa0] sm:$0xff] %v867
    %878 = vst [vmem:[#allocation5 + $0xa8] sm:$0xff] %v868
    %879 = vst [vmem:[#allocation5 + $0xd0] sm:$0xff] %v869
    %880 = vst [vmem:[#allocation5 + $0xd8] sm:$0xff] %v870
    %v881 = vld [vmem:[#allocation3 + $0x10] sm:$0xfe]
    %v882 = vld [vmem:[#allocation3 + $0x18] sm:$0xfe]
    %v883 = vld [vmem:[#allocation3 + $0x20] sm:$0xff]
    %v884 = vld [vmem:[#allocation3 + $0x28] sm:$0xff]
    %v885 = vld [vmem:[#allocation3 + $0x30] sm:$0xff]
    %v886 = vld [vmem:[#allocation3 + $0x38] sm:$0xff]
    %v887 = vld [vmem:[#allocation3 + $0x40] sm:$0xff]
    %v888 = vld [vmem:[#allocation3 + $0x48] sm:$0xff]
    %v889 = vld [vmem:[#allocation3 + $0x50] sm:$0xff]
    %v890 = vld [vmem:[#allocation3 + $0x58] sm:$0xff]
    %v891 = vld [vmem:[#allocation3 + $0x60] sm:$0x1]
    %v892 = vld [vmem:[#allocation3 + $0x68] sm:$0x1]
    %vm905 = vcmask 1046528
    %v906 = vrot.slane %v881, 1
    %v907 = vrot.slane %v883, 1
    %v908 = vsel %vm905, %v906, %v907
    %v909 = vrot.slane %v882, 1
    %v910 = vrot.slane %v884, 1
    %v911 = vsel %vm905, %v909, %v910
    %v912 = vrot.slane %v885, 1
    %v913 = vsel %vm905, %v907, %v912
    %v914 = vrot.slane %v886, 1
    %v915 = vsel %vm905, %v910, %v914
    %v916 = vrot.slane %v887, 1
    %v917 = vsel %vm905, %v912, %v916
    %v918 = vrot.slane %v888, 1
    %v919 = vsel %vm905, %v914, %v918
    %v920 = vrot.slane %v889, 1
    %v921 = vsel %vm905, %v916, %v920
    %v922 = vrot.slane %v890, 1
    %v923 = vsel %vm905, %v918, %v922
    %v924 = vrot.slane %v891, 1
    %v925 = vsel %vm905, %v920, %v924
    %v926 = vrot.slane %v892, 1
    %v927 = vsel %vm905, %v922, %v926
    %938 = vst [vmem:[#allocation5 + $0x20] sm:$0xff] %v908
    %939 = vst [vmem:[#allocation5 + $0x28] sm:$0xff] %v911
    %940 = vst [vmem:[#allocation5 + $0x50] sm:$0xff] %v913
    %941 = vst [vmem:[#allocation5 + $0x58] sm:$0xff] %v915
    %942 = vst [vmem:[#allocation5 + $0x80] sm:$0xff] %v917
    %943 = vst [vmem:[#allocation5 + $0x88] sm:$0xff] %v919
    %944 = vst [vmem:[#allocation5 + $0xb0] sm:$0xff] %v921
    %945 = vst [vmem:[#allocation5 + $0xb8] sm:$0xff] %v923
    %946 = vst [vmem:[#allocation5 + $0xe0] sm:$0xff] %v925
    %947 = vst [vmem:[#allocation5 + $0xe8] sm:$0xff] %v927
    %v948 = vld [vmem:[#allocation5] sm:$0xff]
    %v949 = vld [vmem:[#allocation5 + $0x8] sm:$0xff]
    %v950 = vld [vmem:[#allocation5 + $0x10] sm:$0xff]
    %v951 = vld [vmem:[#allocation5 + $0x18] sm:$0xff]
    %v952 = vld [vmem:[#allocation5 + $0x20] sm:$0xff]
    %v953 = vld [vmem:[#allocation5 + $0x28] sm:$0xff]
    %v954 = vld [vmem:[#allocation5 + $0x30] sm:$0xff]
    %v955 = vld [vmem:[#allocation5 + $0x38] sm:$0xff]
    %v956 = vld [vmem:[#allocation5 + $0x40] sm:$0xff]
    %v957 = vld [vmem:[#allocation5 + $0x48] sm:$0xff]
    %v958 = vld [vmem:[#allocation5 + $0x50] sm:$0xff]
    %v959 = vld [vmem:[#allocation5 + $0x58] sm:$0xff]
    %v960 = vld [vmem:[#allocation5 + $0x60] sm:$0xff]
    %v961 = vld [vmem:[#allocation5 + $0x68] sm:$0xff]
    %v962 = vld [vmem:[#allocation5 + $0x70] sm:$0xff]
    %v963 = vld [vmem:[#allocation5 + $0x78] sm:$0xff]
    %v964 = vld [vmem:[#allocation5 + $0x80] sm:$0xff]
    %v965 = vld [vmem:[#allocation5 + $0x88] sm:$0xff]
    %v966 = vld [vmem:[#allocation5 + $0x90] sm:$0xff]
    %v967 = vld [vmem:[#allocation5 + $0x98] sm:$0xff]
    %v968 = vld [vmem:[#allocation5 + $0xa0] sm:$0xff]
    %v969 = vld [vmem:[#allocation5 + $0xa8] sm:$0xff]
    %v970 = vld [vmem:[#allocation5 + $0xb0] sm:$0xff]
    %v971 = vld [vmem:[#allocation5 + $0xb8] sm:$0xff]
    %v972 = vld [vmem:[#allocation5 + $0xc0] sm:$0xff]
    %v973 = vld [vmem:[#allocation5 + $0xc8] sm:$0xff]
    %v974 = vld [vmem:[#allocation5 + $0xd0] sm:$0xff]
    %v975 = vld [vmem:[#allocation5 + $0xd8] sm:$0xff]
    %v976 = vld [vmem:[#allocation5 + $0xe0] sm:$0xff]
    %v977 = vld [vmem:[#allocation5 + $0xe8] sm:$0xff]
    %v978 = vld [vmem:[%s5] sm:$0xf]
    %v979 = vld [vmem:[%s5 + $0x4] sm:$0xf]
    %v980 = vld [vmem:[%s5 + $0x8] sm:$0xf]
    %v981 = vld [vmem:[%s5 + $0xc] sm:$0xf]
    %v982 = vld [vmem:[%s5 + $0x10] sm:$0xf]
    %v983 = vld [vmem:[%s5 + $0x14] sm:$0xf]
    %v984 = vld [vmem:[%s5 + $0x18] sm:$0xf]
    %v985 = vld [vmem:[%s5 + $0x1c] sm:$0xf]
    %v986 = vld [vmem:[%s5 + $0x20] sm:$0xf]
    %v987 = vld [vmem:[%s5 + $0x24] sm:$0xf]
    %v988 = vld [vmem:[%s5 + $0x28] sm:$0xf]
    %v989 = vld [vmem:[%s5 + $0x2c] sm:$0xf]
    %v990 = vld [vmem:[%s5 + $0x30] sm:$0xf]
    %v991 = vld [vmem:[%s5 + $0x34] sm:$0xf]
    %v992 = vld [vmem:[%s5 + $0x38] sm:$0xf]
    %v993 = vld [vmem:[%s5 + $0x3c] sm:$0xf]
    %v994 = vld [vmem:[%s5 + $0x40] sm:$0xf]
    %v995 = vld [vmem:[%s5 + $0x44] sm:$0xf]
    %v996 = vld [vmem:[%s5 + $0x48] sm:$0xf]
    %v997 = vld [vmem:[%s5 + $0x4c] sm:$0xf]
    %v998 = vld [vmem:[%s5 + $0x50] sm:$0xf]
    %v999 = vld [vmem:[%s5 + $0x54] sm:$0xf]
    %v1000 = vld [vmem:[%s5 + $0x58] sm:$0xf]
    %v1001 = vld [vmem:[%s5 + $0x5c] sm:$0xf]
    %v1002 = vld [vmem:[%s5 + $0x60] sm:$0xf]
    %v1003 = vld [vmem:[%s5 + $0x64] sm:$0xf]
    %v1004 = vld [vmem:[%s5 + $0x68] sm:$0xf]
    %v1005 = vld [vmem:[%s5 + $0x6c] sm:$0xf]
    %v1006 = vld [vmem:[%s5 + $0x70] sm:$0xf]
    %v1007 = vld [vmem:[%s5 + $0x74] sm:$0xf]
    %v1008 = vld [vmem:[%s5 + $0x78] sm:$0xf]
    %v1009 = vld [vmem:[%s5 + $0x7c] sm:$0xf]
    %v1010 = vld [vmem:[%s5 + $0x80] sm:$0xf]
    %v1011 = vld [vmem:[%s5 + $0x84] sm:$0xf]
    %v1012 = vld [vmem:[%s5 + $0x88] sm:$0xf]
    %v1013 = vld [vmem:[%s5 + $0x8c] sm:$0xf]
    %v1014 = vld [vmem:[%s5 + $0x90] sm:$0xf]
    %v1015 = vld [vmem:[%s5 + $0x94] sm:$0xf]
    %v1016 = vld [vmem:[%s5 + $0x98] sm:$0xf]
    %v1017 = vld [vmem:[%s5 + $0x9c] sm:$0xf]
    %v1018 = vld [vmem:[%s5 + $0xa0] sm:$0xf]
    %v1019 = vld [vmem:[%s5 + $0xa4] sm:$0xf]
    %v1020 = vld [vmem:[%s5 + $0xa8] sm:$0xf]
    %v1021 = vld [vmem:[%s5 + $0xac] sm:$0xf]
    %v1022 = vld [vmem:[%s5 + $0xb0] sm:$0xf]
    %v1023 = vld [vmem:[%s5 + $0xb4] sm:$0xf]
    %v1024 = vld [vmem:[%s5 + $0xb8] sm:$0xf]
    %v1025 = vld [vmem:[%s5 + $0xbc] sm:$0xf]
    %v1026 = vld [vmem:[%s5 + $0xc0] sm:$0xf]
    %v1027 = vld [vmem:[%s5 + $0xc4] sm:$0xf]
    %v1028 = vld [vmem:[%s5 + $0xc8] sm:$0xf]
    %v1029 = vld [vmem:[%s5 + $0xcc] sm:$0xf]
    %v1030 = vld [vmem:[%s5 + $0xd0] sm:$0xf]
    %v1031 = vld [vmem:[%s5 + $0xd4] sm:$0xf]
    %v1032 = vld [vmem:[%s5 + $0xd8] sm:$0xf]
    %v1033 = vld [vmem:[%s5 + $0xdc] sm:$0xf]
    %v1034 = vld [vmem:[%s5 + $0xe0] sm:$0xf]
    %v1035 = vld [vmem:[%s5 + $0xe4] sm:$0xf]
    %v1036 = vld [vmem:[%s5 + $0xe8] sm:$0xf]
    %v1037 = vld [vmem:[%s5 + $0xec] sm:$0xf]
    %v1038 = vld [vmem:[%s5 + $0xf0] sm:$0xf]
    %v1039 = vld [vmem:[%s5 + $0xf4] sm:$0xf]
    %v1040 = vld [vmem:[%s5 + $0xf8] sm:$0xf]
    %v1041 = vld [vmem:[%s5 + $0xfc] sm:$0xf]
    %v1042 = vld [vmem:[%s5 + $0x100] sm:$0xf]
    %v1043 = vld [vmem:[%s5 + $0x104] sm:$0xf]
    %v1044 = vld [vmem:[%s5 + $0x108] sm:$0xf]
    %v1045 = vld [vmem:[%s5 + $0x10c] sm:$0xf]
    %v1046 = vld [vmem:[%s5 + $0x110] sm:$0xf]
    %v1047 = vld [vmem:[%s5 + $0x114] sm:$0xf]
    %v1048 = vld [vmem:[%s5 + $0x118] sm:$0xf]
    %v1049 = vld [vmem:[%s5 + $0x11c] sm:$0xf]
    %v1050 = vld [vmem:[%s5 + $0x120] sm:$0xf]
    %v1051 = vld [vmem:[%s5 + $0x124] sm:$0xf]
    %v1052 = vld [vmem:[%s5 + $0x128] sm:$0xf]
    %v1053 = vld [vmem:[%s5 + $0x12c] sm:$0xf]
    %v1054 = vld [vmem:[%s5 + $0x130] sm:$0xf]
    %v1055 = vld [vmem:[%s5 + $0x134] sm:$0xf]
    %v1056 = vld [vmem:[%s5 + $0x138] sm:$0xf]
    %v1057 = vld [vmem:[%s5 + $0x13c] sm:$0xf]
    %v1058 = vld [vmem:[%s5 + $0x140] sm:$0xf]
    %v1059 = vld [vmem:[%s5 + $0x144] sm:$0xf]
    %v1060 = vld [vmem:[%s5 + $0x148] sm:$0xf]
    %v1061 = vld [vmem:[%s5 + $0x14c] sm:$0xf]
    %v1062 = vld [vmem:[%s5 + $0x150] sm:$0xf]
    %v1063 = vld [vmem:[%s5 + $0x154] sm:$0xf]
    %v1064 = vld [vmem:[%s5 + $0x158] sm:$0xf]
    %v1065 = vld [vmem:[%s5 + $0x15c] sm:$0xf]
    %v1066 = vld [vmem:[%s5 + $0x160] sm:$0xf]
    %v1067 = vld [vmem:[%s5 + $0x164] sm:$0xf]
    %v1068 = vld [vmem:[%s5 + $0x168] sm:$0xf]
    %v1069 = vld [vmem:[%s5 + $0x16c] sm:$0xf]
    %v1070 = vld [vmem:[%s5 + $0x170] sm:$0xf]
    %v1071 = vld [vmem:[%s5 + $0x174] sm:$0xf]
    %v1072 = vld [vmem:[%s5 + $0x178] sm:$0xf]
    %v1073 = vld [vmem:[%s5 + $0x17c] sm:$0xf]
    %v1074 = vunpack.c.l.bf16 %v978
    %v1075 = vunpack.c.l.bf16 %v979
    %v1076 = vunpack.c.l.bf16 %v980
    %v1077 = vunpack.c.l.bf16 %v981
    %v1078 = vunpack.c.l.bf16 %v982
    %v1079 = vunpack.c.l.bf16 %v983
    %v1080 = vunpack.c.l.bf16 %v984
    %v1081 = vunpack.c.l.bf16 %v985
    %v1082 = vunpack.c.l.bf16 %v986
    %v1083 = vunpack.c.l.bf16 %v987
    %v1084 = vunpack.c.l.bf16 %v988
    %v1085 = vunpack.c.l.bf16 %v989
    %v1086 = vunpack.c.l.bf16 %v990
    %v1087 = vunpack.c.l.bf16 %v991
    %v1088 = vunpack.c.l.bf16 %v992
    %v1089 = vunpack.c.l.bf16 %v993
    %v1090 = vunpack.c.l.bf16 %v994
    %v1091 = vunpack.c.l.bf16 %v995
    %v1092 = vunpack.c.l.bf16 %v996
    %v1093 = vunpack.c.l.bf16 %v997
    %v1094 = vunpack.c.l.bf16 %v998
    %v1095 = vunpack.c.l.bf16 %v999
    %v1096 = vunpack.c.l.bf16 %v1000
    %v1097 = vunpack.c.l.bf16 %v1001
    %v1098 = vunpack.c.l.bf16 %v1002
    %v1099 = vunpack.c.l.bf16 %v1003
    %v1100 = vunpack.c.l.bf16 %v1004
    %v1101 = vunpack.c.l.bf16 %v1005
    %v1102 = vunpack.c.l.bf16 %v1006
    %v1103 = vunpack.c.l.bf16 %v1007
    %v1104 = vunpack.c.l.bf16 %v1008
    %v1105 = vunpack.c.l.bf16 %v1009
    %v1106 = vunpack.c.l.bf16 %v1010
    %v1107 = vunpack.c.l.bf16 %v1011
    %v1108 = vunpack.c.l.bf16 %v1012
    %v1109 = vunpack.c.l.bf16 %v1013
    %v1110 = vunpack.c.l.bf16 %v1014
    %v1111 = vunpack.c.l.bf16 %v1015
    %v1112 = vunpack.c.l.bf16 %v1016
    %v1113 = vunpack.c.l.bf16 %v1017
    %v1114 = vunpack.c.l.bf16 %v1018
    %v1115 = vunpack.c.l.bf16 %v1019
    %v1116 = vunpack.c.l.bf16 %v1020
    %v1117 = vunpack.c.l.bf16 %v1021
    %v1118 = vunpack.c.l.bf16 %v1022
    %v1119 = vunpack.c.l.bf16 %v1023
    %v1120 = vunpack.c.l.bf16 %v1024
    %v1121 = vunpack.c.l.bf16 %v1025
    %v1122 = vunpack.c.l.bf16 %v1026
    %v1123 = vunpack.c.l.bf16 %v1027
    %v1124 = vunpack.c.l.bf16 %v1028
    %v1125 = vunpack.c.l.bf16 %v1029
    %v1126 = vunpack.c.l.bf16 %v1030
    %v1127 = vunpack.c.l.bf16 %v1031
    %v1128 = vunpack.c.l.bf16 %v1032
    %v1129 = vunpack.c.l.bf16 %v1033
    %v1130 = vunpack.c.l.bf16 %v1034
    %v1131 = vunpack.c.l.bf16 %v1035
    %v1132 = vunpack.c.l.bf16 %v1036
    %v1133 = vunpack.c.l.bf16 %v1037
    %v1134 = vunpack.c.l.bf16 %v1038
    %v1135 = vunpack.c.l.bf16 %v1039
    %v1136 = vunpack.c.l.bf16 %v1040
    %v1137 = vunpack.c.l.bf16 %v1041
    %v1138 = vunpack.c.l.bf16 %v1042
    %v1139 = vunpack.c.l.bf16 %v1043
    %v1140 = vunpack.c.l.bf16 %v1044
    %v1141 = vunpack.c.l.bf16 %v1045
    %v1142 = vunpack.c.l.bf16 %v1046
    %v1143 = vunpack.c.l.bf16 %v1047
    %v1144 = vunpack.c.l.bf16 %v1048
    %v1145 = vunpack.c.l.bf16 %v1049
    %v1146 = vunpack.c.l.bf16 %v1050
    %v1147 = vunpack.c.l.bf16 %v1051
    %v1148 = vunpack.c.l.bf16 %v1052
    %v1149 = vunpack.c.l.bf16 %v1053
    %v1150 = vunpack.c.l.bf16 %v1054
    %v1151 = vunpack.c.l.bf16 %v1055
    %v1152 = vunpack.c.l.bf16 %v1056
    %v1153 = vunpack.c.l.bf16 %v1057
    %v1154 = vunpack.c.l.bf16 %v1058
    %v1155 = vunpack.c.l.bf16 %v1059
    %v1156 = vunpack.c.l.bf16 %v1060
    %v1157 = vunpack.c.l.bf16 %v1061
    %v1158 = vunpack.c.l.bf16 %v1062
    %v1159 = vunpack.c.l.bf16 %v1063
    %v1160 = vunpack.c.l.bf16 %v1064
    %v1161 = vunpack.c.l.bf16 %v1065
    %v1162 = vunpack.c.l.bf16 %v1066
    %v1163 = vunpack.c.l.bf16 %v1067
    %v1164 = vunpack.c.l.bf16 %v1068
    %v1165 = vunpack.c.l.bf16 %v1069
    %v1166 = vunpack.c.l.bf16 %v1070
    %v1167 = vunpack.c.l.bf16 %v1071
    %v1168 = vunpack.c.l.bf16 %v1072
    %v1169 = vunpack.c.l.bf16 %v1073
    %v1170 = vld [vmem:[%s6] sm:$0x1]
    %v1172 = vlaneseq
    %v1173 = vshrl.u32 %v1172, 7
    %v1174 = vsub.s32 0, %v1173
    %v1175 = vrot.slane %v1170, %v1174
    %1177 = vmatprep.subr.mxu0 0.0
    %1178 = vmatpush1.msra.mxu0 %v1074
    %1179 = vmatprep.subr.mxu0 0.0
    %1180 = vmatpush1.msra.mxu0 %v1075
    %1181 = vmatprep.subr.mxu0 0.0
    %1182 = vmatpush1.msra.mxu0 %v1076
    %1183 = vmatprep.subr.mxu0 0.0
    %1184 = vmatpush1.msra.mxu0 %v1077
    %1185 = vmatprep.subr.mxu0 0.0
    %1186 = vmatpush1.msra.mxu0 %v1078
    %1187 = vmatprep.subr.mxu0 0.0
    %1188 = vmatpush1.msra.mxu0 %v1079
    %1189 = vmatprep.subr.mxu0 0.0
    %1190 = vmatpush1.msra.mxu0 %v1080
    %1191 = vmatprep.subr.mxu0 0.0
    %1192 = vmatpush1.msra.mxu0 %v1081
    %1193 = vmatprep.subr.mxu0 0.0
    %1194 = vmatpush1.msra.mxu0 %v1082
    %1195 = vmatprep.subr.mxu0 0.0
    %1196 = vmatpush1.msra.mxu0 %v1083
    %1197 = vmatprep.subr.mxu0 0.0
    %1198 = vmatpush1.msra.mxu0 %v1084
    %1199 = vmatprep.subr.mxu0 0.0
    %1200 = vmatpush1.msra.mxu0 %v1085
    %1201 = vmatprep.subr.mxu0 0.0
    %1202 = vmatpush1.msra.mxu0 %v1086
    %1203 = vmatprep.subr.mxu0 0.0
    %1204 = vmatpush1.msra.mxu0 %v1087
    %1205 = vmatprep.subr.mxu0 0.0
    %1206 = vmatpush1.msra.mxu0 %v1088
    %1207 = vmatprep.subr.mxu0 0.0
    %1208 = vmatpush1.msra.mxu0 %v1089
    %1209 = vmatprep.subr.mxu0 0.0
    %1210 = vmatpush1.msra.mxu0 %v1090
    %1211 = vmatprep.subr.mxu0 0.0
    %1212 = vmatpush1.msra.mxu0 %v1091
    %1213 = vmatprep.subr.mxu0 0.0
    %1214 = vmatpush1.msra.mxu0 %v1092
    %1215 = vmatprep.subr.mxu0 0.0
    %1216 = vmatpush1.msra.mxu0 %v1093
    %1217 = vmatprep.subr.mxu0 0.0
    %1218 = vmatpush1.msra.mxu0 %v1094
    %1219 = vmatprep.subr.mxu0 0.0
    %1220 = vmatpush1.msra.mxu0 %v1095
    %1221 = vmatprep.subr.mxu0 0.0
    %1222 = vmatpush1.msra.mxu0 %v1096
    %1223 = vmatprep.subr.mxu0 0.0
    %1224 = vmatpush1.msra.mxu0 %v1097
    %1225 = vmatprep.subr.mxu0 0.0
    %1226 = vmatpush1.msra.mxu0 %v1098
    %1227 = vmatprep.subr.mxu0 0.0
    %1228 = vmatpush1.msra.mxu0 %v1099
    %1229 = vmatprep.subr.mxu0 0.0
    %1230 = vmatpush1.msra.mxu0 %v1100
    %1231 = vmatprep.subr.mxu0 0.0
    %1232 = vmatpush1.msra.mxu0 %v1101
    %1233 = vmatprep.subr.mxu0 0.0
    %1234 = vmatpush1.msra.mxu0 %v1102
    %1235 = vmatprep.subr.mxu0 0.0
    %1236 = vmatpush1.msra.mxu0 %v1103
    %1237 = vmatprep.subr.mxu0 0.0
    %1238 = vmatpush1.msra.mxu0 %v1104
    %1239 = vmatprep.subr.mxu0 0.0
    %1240 = vmatpush1.msra.mxu0 %v1105
    %1241 = vmatprep.mubr.f32.mxu0 %v949
    %1242 = vmatmul.mubr.f32.gmra.mrb[0].mxu0 %v948
    %v1243 = vpop.f32.mrb[0].mxu0
    %v1244 = vadd.f32 %v1175, %v1243
    %v1245 = vpop.f32.mrb[0].mxu0
    %1246 = vmatprep.mubr.f32.mxu0 %v955
    %1247 = vmatmul.mubr.f32.gmra.mrb[0].mxu0 %v954
    %v1248 = vpop.f32.mrb[0].mxu0
    %v1249 = vadd.f32 %v1175, %v1248
    %v1250 = vpop.f32.mrb[0].mxu0
    %1251 = vmatprep.mubr.f32.mxu0 %v961
    %1252 = vmatmul.mubr.f32.gmra.mrb[0].mxu0 %v960
    %v1253 = vpop.f32.mrb[0].mxu0
    %v1254 = vadd.f32 %v1175, %v1253
    %v1255 = vpop.f32.mrb[0].mxu0
    %1256 = vmatprep.mubr.f32.mxu0 %v967
    %1257 = vmatmul.mubr.f32.gmra.mrb[0].mxu0 %v966
    %v1258 = vpop.f32.mrb[0].mxu0
    %v1259 = vadd.f32 %v1175, %v1258
    %v1260 = vpop.f32.mrb[0].mxu0
    %1261 = vmatprep.mubr.f32.mxu0 %v973
    %1262 = vmatmul.mubr.f32.gmra.mrb[0].mxu0 %v972
    %v1263 = vpop.f32.mrb[0].mxu0
    %v1264 = vadd.f32 %v1175, %v1263
    %v1265 = vpop.f32.mrb[0].mxu0
    %1266 = vdwg.mxu0
    %1267 = vmatprep.subr.mxu0 0.0
    %1268 = vmatpush1.msra.mxu0 %v1106
    %1269 = vmatprep.subr.mxu0 0.0
    %1270 = vmatpush1.msra.mxu0 %v1107
    %1271 = vmatprep.subr.mxu0 0.0
    %1272 = vmatpush1.msra.mxu0 %v1108
    %1273 = vmatprep.subr.mxu0 0.0
    %1274 = vmatpush1.msra.mxu0 %v1109
    %1275 = vmatprep.subr.mxu0 0.0
    %1276 = vmatpush1.msra.mxu0 %v1110
    %1277 = vmatprep.subr.mxu0 0.0
    %1278 = vmatpush1.msra.mxu0 %v1111
    %1279 = vmatprep.subr.mxu0 0.0
    %1280 = vmatpush1.msra.mxu0 %v1112
    %1281 = vmatprep.subr.mxu0 0.0
    %1282 = vmatpush1.msra.mxu0 %v1113
    %1283 = vmatprep.subr.mxu0 0.0
    %1284 = vmatpush1.msra.mxu0 %v1114
    %1285 = vmatprep.subr.mxu0 0.0
    %1286 = vmatpush1.msra.mxu0 %v1115
    %1287 = vmatprep.subr.mxu0 0.0
    %1288 = vmatpush1.msra.mxu0 %v1116
    %1289 = vmatprep.subr.mxu0 0.0
    %1290 = vmatpush1.msra.mxu0 %v1117
    %1291 = vmatprep.subr.mxu0 0.0
    %1292 = vmatpush1.msra.mxu0 %v1118
    %1293 = vmatprep.subr.mxu0 0.0
    %1294 = vmatpush1.msra.mxu0 %v1119
    %1295 = vmatprep.subr.mxu0 0.0
    %1296 = vmatpush1.msra.mxu0 %v1120
    %1297 = vmatprep.subr.mxu0 0.0
    %1298 = vmatpush1.msra.mxu0 %v1121
    %1299 = vmatprep.subr.mxu0 0.0
    %1300 = vmatpush1.msra.mxu0 %v1122
    %1301 = vmatprep.subr.mxu0 0.0
    %1302 = vmatpush1.msra.mxu0 %v1123
    %1303 = vmatprep.subr.mxu0 0.0
    %1304 = vmatpush1.msra.mxu0 %v1124
    %1305 = vmatprep.subr.mxu0 0.0
    %1306 = vmatpush1.msra.mxu0 %v1125
    %1307 = vmatprep.subr.mxu0 0.0
    %1308 = vmatpush1.msra.mxu0 %v1126
    %1309 = vmatprep.subr.mxu0 0.0
    %1310 = vmatpush1.msra.mxu0 %v1127
    %1311 = vmatprep.subr.mxu0 0.0
    %1312 = vmatpush1.msra.mxu0 %v1128
    %1313 = vmatprep.subr.mxu0 0.0
    %1314 = vmatpush1.msra.mxu0 %v1129
    %1315 = vmatprep.subr.mxu0 0.0
    %1316 = vmatpush1.msra.mxu0 %v1130
    %1317 = vmatprep.subr.mxu0 0.0
    %1318 = vmatpush1.msra.mxu0 %v1131
    %1319 = vmatprep.subr.mxu0 0.0
    %1320 = vmatpush1.msra.mxu0 %v1132
    %1321 = vmatprep.subr.mxu0 0.0
    %1322 = vmatpush1.msra.mxu0 %v1133
    %1323 = vmatprep.subr.mxu0 0.0
    %1324 = vmatpush1.msra.mxu0 %v1134
    %1325 = vmatprep.subr.mxu0 0.0
    %1326 = vmatpush1.msra.mxu0 %v1135
    %1327 = vmatprep.subr.mxu0 0.0
    %1328 = vmatpush1.msra.mxu0 %v1136
    %1329 = vmatprep.subr.mxu0 0.0
    %1330 = vmatpush1.msra.mxu0 %v1137
    %1331 = vmatprep.mubr.f32.mxu0 %v951
    %1332 = vmatmul.mubr.f32.gmra.mrb[0].mxu0 %v950
    %v1333 = vpop.f32.mrb[0].mxu0
    %v1334 = vadd.f32 %v1244, %v1333
    %v1335 = vpop.f32.mrb[0].mxu0
    %1336 = vmatprep.mubr.f32.mxu0 %v957
    %1337 = vmatmul.mubr.f32.gmra.mrb[0].mxu0 %v956
    %v1338 = vpop.f32.mrb[0].mxu0
    %v1339 = vadd.f32 %v1249, %v1338
    %v1340 = vpop.f32.mrb[0].mxu0
    %1341 = vmatprep.mubr.f32.mxu0 %v963
    %1342 = vmatmul.mubr.f32.gmra.mrb[0].mxu0 %v962
    %v1343 = vpop.f32.mrb[0].mxu0
    %v1344 = vadd.f32 %v1254, %v1343
    %v1345 = vpop.f32.mrb[0].mxu0
    %1346 = vmatprep.mubr.f32.mxu0 %v969
    %1347 = vmatmul.mubr.f32.gmra.mrb[0].mxu0 %v968
    %v1348 = vpop.f32.mrb[0].mxu0
    %v1349 = vadd.f32 %v1259, %v1348
    %v1350 = vpop.f32.mrb[0].mxu0
    %1351 = vmatprep.mubr.f32.mxu0 %v975
    %1352 = vmatmul.mubr.f32.gmra.mrb[0].mxu0 %v974
    %v1353 = vpop.f32.mrb[0].mxu0
    %v1354 = vadd.f32 %v1264, %v1353
    %v1355 = vpop.f32.mrb[0].mxu0
    %1356 = vdwg.mxu0
    %1357 = vmatprep.subr.mxu0 0.0
    %1358 = vmatpush1.msra.mxu0 %v1138
    %1359 = vmatprep.subr.mxu0 0.0
    %1360 = vmatpush1.msra.mxu0 %v1139
    %1361 = vmatprep.subr.mxu0 0.0
    %1362 = vmatpush1.msra.mxu0 %v1140
    %1363 = vmatprep.subr.mxu0 0.0
    %1364 = vmatpush1.msra.mxu0 %v1141
    %1365 = vmatprep.subr.mxu0 0.0
    %1366 = vmatpush1.msra.mxu0 %v1142
    %1367 = vmatprep.subr.mxu0 0.0
    %1368 = vmatpush1.msra.mxu0 %v1143
    %1369 = vmatprep.subr.mxu0 0.0
    %1370 = vmatpush1.msra.mxu0 %v1144
    %1371 = vmatprep.subr.mxu0 0.0
    %1372 = vmatpush1.msra.mxu0 %v1145
    %1373 = vmatprep.subr.mxu0 0.0
    %1374 = vmatpush1.msra.mxu0 %v1146
    %1375 = vmatprep.subr.mxu0 0.0
    %1376 = vmatpush1.msra.mxu0 %v1147
    %1377 = vmatprep.subr.mxu0 0.0
    %1378 = vmatpush1.msra.mxu0 %v1148
    %1379 = vmatprep.subr.mxu0 0.0
    %1380 = vmatpush1.msra.mxu0 %v1149
    %1381 = vmatprep.subr.mxu0 0.0
    %1382 = vmatpush1.msra.mxu0 %v1150
    %1383 = vmatprep.subr.mxu0 0.0
    %1384 = vmatpush1.msra.mxu0 %v1151
    %1385 = vmatprep.subr.mxu0 0.0
    %1386 = vmatpush1.msra.mxu0 %v1152
    %1387 = vmatprep.subr.mxu0 0.0
    %1388 = vmatpush1.msra.mxu0 %v1153
    %1389 = vmatprep.subr.mxu0 0.0
    %1390 = vmatpush1.msra.mxu0 %v1154
    %1391 = vmatprep.subr.mxu0 0.0
    %1392 = vmatpush1.msra.mxu0 %v1155
    %1393 = vmatprep.subr.mxu0 0.0
    %1394 = vmatpush1.msra.mxu0 %v1156
    %1395 = vmatprep.subr.mxu0 0.0
    %1396 = vmatpush1.msra.mxu0 %v1157
    %1397 = vmatprep.subr.mxu0 0.0
    %1398 = vmatpush1.msra.mxu0 %v1158
    %1399 = vmatprep.subr.mxu0 0.0
    %1400 = vmatpush1.msra.mxu0 %v1159
    %1401 = vmatprep.subr.mxu0 0.0
    %1402 = vmatpush1.msra.mxu0 %v1160
    %1403 = vmatprep.subr.mxu0 0.0
    %1404 = vmatpush1.msra.mxu0 %v1161
    %1405 = vmatprep.subr.mxu0 0.0
    %1406 = vmatpush1.msra.mxu0 %v1162
    %1407 = vmatprep.subr.mxu0 0.0
    %1408 = vmatpush1.msra.mxu0 %v1163
    %1409 = vmatprep.subr.mxu0 0.0
    %1410 = vmatpush1.msra.mxu0 %v1164
    %1411 = vmatprep.subr.mxu0 0.0
    %1412 = vmatpush1.msra.mxu0 %v1165
    %1413 = vmatprep.subr.mxu0 0.0
    %1414 = vmatpush1.msra.mxu0 %v1166
    %1415 = vmatprep.subr.mxu0 0.0
    %1416 = vmatpush1.msra.mxu0 %v1167
    %1417 = vmatprep.subr.mxu0 0.0
    %1418 = vmatpush1.msra.mxu0 %v1168
    %1419 = vmatprep.subr.mxu0 0.0
    %1420 = vmatpush1.msra.mxu0 %v1169
    %1421 = vmatprep.mubr.f32.mxu0 %v953
    %1422 = vmatmul.mubr.f32.gmra.mrb[0].mxu0 %v952
    %v1423 = vpop.f32.mrb[0].mxu0
    %v1424 = vadd.f32 %v1334, %v1423
    %v1425 = vpop.f32.mrb[0].mxu0
    %1426 = vmatprep.mubr.f32.mxu0 %v959
    %1427 = vmatmul.mubr.f32.gmra.mrb[0].mxu0 %v958
    %v1428 = vpop.f32.mrb[0].mxu0
    %v1429 = vadd.f32 %v1339, %v1428
    %v1430 = vpop.f32.mrb[0].mxu0
    %1431 = vmatprep.mubr.f32.mxu0 %v965
    %1432 = vmatmul.mubr.f32.gmra.mrb[0].mxu0 %v964
    %v1433 = vpop.f32.mrb[0].mxu0
    %v1434 = vadd.f32 %v1344, %v1433
    %v1435 = vpop.f32.mrb[0].mxu0
    %1436 = vmatprep.mubr.f32.mxu0 %v971
    %1437 = vmatmul.mubr.f32.gmra.mrb[0].mxu0 %v970
    %v1438 = vpop.f32.mrb[0].mxu0
    %v1439 = vadd.f32 %v1349, %v1438
    %v1440 = vpop.f32.mrb[0].mxu0
    %1441 = vmatprep.mubr.f32.mxu0 %v977
    %1442 = vmatmul.mubr.f32.gmra.mrb[0].mxu0 %v976
    %v1443 = vpop.f32.mrb[0].mxu0
    %v1444 = vadd.f32 %v1354, %v1443
    %v1445 = vpop.f32.mrb[0].mxu0
    %1446 = vdwg.mxu0
    %v1447 = vmax.f32 %v1424, 0.0
    %v1448 = vmax.f32 %v1429, 0.0
    %v1449 = vmax.f32 %v1434, 0.0
    %v1450 = vmax.f32 %v1439, 0.0
    %v1451 = vmax.f32 %v1444, 0.0
    %v1452 = vld [vmem:[%s7] sm:$0x3]
    %vm1453 = vcmask 326656
    %v1455 = vsel %vm1453, %v1452, 0
    %1457 = vmatprep.subr.mxu0 0.0
    %1458 = vmatpush1.msra.mxu0 %v1447
    %1459 = vmatprep.subr.mxu0 0.0
    %1460 = vmatpush1.msra.mxu0 %v1448
    %1461 = vmatprep.subr.mxu0 0.0
    %1462 = vmatpush1.msra.mxu0 %v1449
    %1463 = vmatprep.subr.mxu0 0.0
    %1464 = vmatpush1.msra.mxu0 %v1450
    %1465 = vmatprep.subr.mxu0 0.0
    %1466 = vmatpush1.msra.mxu0 %v1451
    %1467 = vmatprep.subr.mxu0 0.0
    %1468 = vmatpush1.msra.mxu0 0.0
    %1469 = vmatprep.subr.mxu0 0.0
    %1470 = vmatpush1.msra.mxu0 0.0
    %1471 = vmatprep.subr.mxu0 0.0
    %1472 = vmatpush1.msra.mxu0 0.0
    %1473 = vmatprep.subr.mxu0 0.0
    %1474 = vmatpush1.msra.mxu0 0.0
    %1475 = vmatprep.subr.mxu0 0.0
    %1476 = vmatpush1.msra.mxu0 0.0
    %1477 = vmatprep.subr.mxu0 0.0
    %1478 = vmatpush1.msra.mxu0 0.0
    %1479 = vmatprep.subr.mxu0 0.0
    %1480 = vmatpush1.msra.mxu0 0.0
    %1481 = vmatprep.subr.mxu0 0.0
    %1482 = vmatpush1.msra.mxu0 0.0
    %1483 = vmatprep.subr.mxu0 0.0
    %1484 = vmatpush1.msra.mxu0 0.0
    %1485 = vmatprep.subr.mxu0 0.0
    %1486 = vmatpush1.msra.mxu0 0.0
    %1487 = vmatprep.subr.mxu0 0.0
    %1488 = vmatpush1.msra.mxu0 0.0
    %1489 = vmatprep.subr.mxu0 0.0
    %1490 = vmatpush1.msra.mxu0 0.0
    %1491 = vmatprep.subr.mxu0 0.0
    %1492 = vmatpush1.msra.mxu0 0.0
    %1493 = vmatprep.subr.mxu0 0.0
    %1494 = vmatpush1.msra.mxu0 0.0
    %1495 = vmatprep.subr.mxu0 0.0
    %1496 = vmatpush1.msra.mxu0 0.0
    %1497 = vmatprep.subr.mxu0 0.0
    %1498 = vmatpush1.msra.mxu0 0.0
    %1499 = vmatprep.subr.mxu0 0.0
    %1500 = vmatpush1.msra.mxu0 0.0
    %1501 = vmatprep.subr.mxu0 0.0
    %1502 = vmatpush1.msra.mxu0 0.0
    %1503 = vmatprep.subr.mxu0 0.0
    %1504 = vmatpush1.msra.mxu0 0.0
    %1505 = vmatprep.subr.mxu0 0.0
    %1506 = vmatpush1.msra.mxu0 0.0
    %1507 = vmatprep.subr.mxu0 0.0
    %1508 = vmatpush1.msra.mxu0 0.0
    %1509 = vmatprep.subr.mxu0 0.0
    %1510 = vmatpush1.msra.mxu0 0.0
    %1511 = vmatprep.subr.mxu0 0.0
    %1512 = vmatpush1.msra.mxu0 0.0
    %1513 = vmatprep.subr.mxu0 0.0
    %1514 = vmatpush1.msra.mxu0 0.0
    %1515 = vmatprep.subr.mxu0 0.0
    %1516 = vmatpush1.msra.mxu0 0.0
    %1517 = vmatprep.subr.mxu0 0.0
    %1518 = vmatpush1.msra.mxu0 0.0
    %1519 = vmatprep.subr.mxu0 0.0
    %1520 = vmatpush1.msra.mxu0 0.0
    %1521 = vmatprep.mubr.f32.mxu0 0.0
    %1522 = vmatmul.mubr.f32.gmra.mrb[0].mxu0 %v1455
    %v1523 = vpop.f32.mrb[0].mxu0
    %v1524 = vadd.f32 0.0, %v1523
    %v1525 = vpop.f32.mrb[0].mxu0
    %1526 = vdwg.mxu0
    %v1527 = vld [vmem:[%s8] sm:$0xff]
    %v1528 = vld [vmem:[%s8 + $0x8] sm:$0xff]
    %v1529 = vld [vmem:[%s8 + $0x10] sm:$0xff]
    %v1530 = vld [vmem:[%s8 + $0x18] sm:$0xff]
    %v1531 = vld [vmem:[%s8 + $0x20] sm:$0xff]
    %v1532 = vld [vmem:[%s8 + $0x28] sm:$0xff]
    %v1533 = vld [vmem:[%s8 + $0x30] sm:$0xff]
    %v1534 = vld [vmem:[%s8 + $0x38] sm:$0xff]
    %v1535 = vld [vmem:[%s8 + $0x40] sm:$0xff]
    %v1536 = vld [vmem:[%s8 + $0x48] sm:$0xff]
    %v1537 = vld [vmem:[%s8 + $0x50] sm:$0xff]
    %v1538 = vld [vmem:[%s8 + $0x58] sm:$0xff]
    %v1539 = vld [vmem:[%s8 + $0x60] sm:$0xff]
    %v1540 = vld [vmem:[%s8 + $0x68] sm:$0xff]
    %v1541 = vld [vmem:[%s8 + $0x70] sm:$0xff]
    %v1542 = vld [vmem:[%s8 + $0x78] sm:$0xff]
    %v1543 = vld [vmem:[%s9] sm:$0x1]
    %v1545 = vlaneseq
    %v1546 = vshrl.u32 %v1545, 7
    %v1547 = vsub.s32 0, %v1546
    %v1548 = vrot.slane %v1543, %v1547
    %1550 = vmatprep.subr.mxu0 0.0
    %1551 = vmatpush1.msra.mxu0 %v1527
    %1552 = vmatprep.subr.mxu0 0.0
    %1553 = vmatpush1.msra.mxu0 %v1528
    %1554 = vmatprep.subr.mxu0 0.0
    %1555 = vmatpush1.msra.mxu0 %v1529
    %1556 = vmatprep.subr.mxu0 0.0
    %1557 = vmatpush1.msra.mxu0 %v1530
    %1558 = vmatprep.subr.mxu0 0.0
    %1559 = vmatpush1.msra.mxu0 %v1531
    %1560 = vmatprep.subr.mxu0 0.0
    %1561 = vmatpush1.msra.mxu0 %v1532
    %1562 = vmatprep.subr.mxu0 0.0
    %1563 = vmatpush1.msra.mxu0 %v1533
    %1564 = vmatprep.subr.mxu0 0.0
    %1565 = vmatpush1.msra.mxu0 %v1534
    %1566 = vmatprep.subr.mxu0 0.0
    %1567 = vmatpush1.msra.mxu0 %v1535
    %1568 = vmatprep.subr.mxu0 0.0
    %1569 = vmatpush1.msra.mxu0 %v1536
    %1570 = vmatprep.subr.mxu0 0.0
    %1571 = vmatpush1.msra.mxu0 %v1537
    %1572 = vmatprep.subr.mxu0 0.0
    %1573 = vmatpush1.msra.mxu0 %v1538
    %1574 = vmatprep.subr.mxu0 0.0
    %1575 = vmatpush1.msra.mxu0 %v1539
    %1576 = vmatprep.subr.mxu0 0.0
    %1577 = vmatpush1.msra.mxu0 %v1540
    %1578 = vmatprep.subr.mxu0 0.0
    %1579 = vmatpush1.msra.mxu0 %v1541
    %1580 = vmatprep.subr.mxu0 0.0
    %1581 = vmatpush1.msra.mxu0 %v1542
    %1582 = vmatprep.subr.mxu0 0.0
    %1583 = vmatpush1.msra.mxu0 0.0
    %1584 = vmatprep.subr.mxu0 0.0
    %1585 = vmatpush1.msra.mxu0 0.0
    %1586 = vmatprep.subr.mxu0 0.0
    %1587 = vmatpush1.msra.mxu0 0.0
    %1588 = vmatprep.subr.mxu0 0.0
    %1589 = vmatpush1.msra.mxu0 0.0
    %1590 = vmatprep.subr.mxu0 0.0
    %1591 = vmatpush1.msra.mxu0 0.0
    %1592 = vmatprep.subr.mxu0 0.0
    %1593 = vmatpush1.msra.mxu0 0.0
    %1594 = vmatprep.subr.mxu0 0.0
    %1595 = vmatpush1.msra.mxu0 0.0
    %1596 = vmatprep.subr.mxu0 0.0
    %1597 = vmatpush1.msra.mxu0 0.0
    %1598 = vmatprep.subr.mxu0 0.0
    %1599 = vmatpush1.msra.mxu0 0.0
    %1600 = vmatprep.subr.mxu0 0.0
    %1601 = vmatpush1.msra.mxu0 0.0
    %1602 = vmatprep.subr.mxu0 0.0
    %1603 = vmatpush1.msra.mxu0 0.0
    %1604 = vmatprep.subr.mxu0 0.0
    %1605 = vmatpush1.msra.mxu0 0.0
    %1606 = vmatprep.subr.mxu0 0.0
    %1607 = vmatpush1.msra.mxu0 0.0
    %1608 = vmatprep.subr.mxu0 0.0
    %1609 = vmatpush1.msra.mxu0 0.0
    %1610 = vmatprep.subr.mxu0 0.0
    %1611 = vmatpush1.msra.mxu0 0.0
    %1612 = vmatprep.subr.mxu0 0.0
    %1613 = vmatpush1.msra.mxu0 0.0
    %1614 = vmatprep.mubr.f32.mxu0 0.0
    %1615 = vmatmul.mubr.f32.gmra.mrb[0].mxu0 %v1524
    %v1616 = vpop.f32.mrb[0].mxu0
    %v1617 = vadd.f32 %v1548, %v1616
    %v1618 = vpop.f32.mrb[0].mxu0
    %1619 = vdwg.mxu0
    %vm1620 = vcmask 33792
    %1621 = vst.msk [vmem:[#allocation6] sm:$0x3] %vm1620, %v1617
    // Predicated region
    $region42: #{fcn_forward.1} parent=1 // pred_check
      _
    $region43: #{fcn_forward.1} parent=1 // pred_check_branch
      %1623 = sbr.rel (0) target = $region45
    $region44: #{fcn_forward.1} parent=1 // pred_region
      %s1625 = ssub.s32 32, 32
      %1626 = vsyncadd [#allocation7], %s1625
      %s1628 = sshll.u32 [#allocation6], 4
      %s1629 = int_to_ptr.vmem [resolvable:$true] %s1628
      %1631 = dma.vmem_to_hbm [thread:$0]  %s1629, 32, %s10, [#allocation7]
    $region45: #{fcn_forward.1} parent=1 // pred_fallthru
      _
    // Predicated region
    $region46: #{fcn_forward.1} parent=1 // pred_check
      _
    $region47: #{fcn_forward.1} parent=1 // pred_check_branch
      %1633 = sbr.rel (0) target = $region49
    $region48: #{fcn_forward.1} parent=1 // pred_region
      %1634 = dma.done [#allocation7], 32
    $region49: #{fcn_forward.1} parent=1 // pred_fallthru
      _
    %1635 = vsyncpa [#allocation7], 1

</llo_original>
